<compile_context>
chip_gen: v7x
topology: tpu7x:2x2x1
jax: 0.10.0
libtpu: 0.0.40
codegen_flags: <defaults>
</compile_context>

<pallas_src>
import math
import functools

import jax
import jax.numpy as jnp
from jax.experimental import pallas as pl
from jax.experimental.pallas import tpu as pltpu


def _attention_kernel(intent_ref, slot_ref, mask_ref,
                      w_int_ref, b_int_ref, w_slot_ref, b_slot_ref,
                      out_intent_ref, out_slot_ref,
                      *, n_heads, head_dim, seq_len, block_b, matmul_dtype):
    """Per-(batch-block) kernel.

    intent_ref / slot_ref : (Bt, S, H)  VMEM
    mask_ref              : (Bt, 1, S)  VMEM (float, 1.0 keep / 0.0 mask)
    w_int_ref             : (H, 3H)     VMEM  columns = [Wq | Wk_slot | Wv_slot]
    b_int_ref             : (1, 3H)     VMEM
    w_slot_ref            : (H, 3H)     VMEM  columns = [Wk | Wv | Wq_slot]
    b_slot_ref            : (1, 3H)     VMEM
    out_intent_ref        : (Bt, S, H)  VMEM
    out_slot_ref          : (Bt, S, H)  VMEM
    """
    hidden = n_heads * head_dim
    inv_scale = 1.0 / math.sqrt(float(head_dim))
    rows = block_b * seq_len

    # Position-wise projections: fold (Bt, S) into one M dimension.
    x_int = intent_ref[...].reshape(rows, hidden)
    x_slot = slot_ref[...].reshape(rows, hidden)

    # Two fused projections (MXU).  Accumulate in f32; bias add in f32.
    proj_int = jnp.dot(x_int.astype(matmul_dtype), w_int_ref[...].astype(matmul_dtype),
                       preferred_element_type=jnp.float32) + b_int_ref[...]
    proj_slot = jnp.dot(x_slot.astype(matmul_dtype), w_slot_ref[...].astype(matmul_dtype),
                        preferred_element_type=jnp.float32) + b_slot_ref[...]

    def branch(q, k, v, mask_add):
        # q already carries the 1/sqrt(head_dim) factor.
        ctxs = []
        for h in range(n_heads):
            lo = h * head_dim
            hi = lo + head_dim
            qh = q[:, lo:hi]                      # (S, hd) f32
            kh = k[:, lo:hi]                      # (S, hd) f32
            vh = v[:, lo:hi]                      # (S, hd) f32
            scores = jnp.dot(qh.astype(matmul_dtype), kh.astype(matmul_dtype).T,
                             preferred_element_type=jnp.float32)       # (S, S) f32
            scores = scores + mask_add            # broadcast (1, S) over query rows
            scores = scores - jnp.max(scores, axis=-1, keepdims=True)  # stable
            p = jnp.exp(scores)                                        # f32
            denom = jnp.sum(p, axis=-1, keepdims=True)                 # (S, 1) f32
            # Deferred normalization: scale (S, hd) context instead of dividing (S, S).
            ctx = jnp.dot(p.astype(matmul_dtype), vh.astype(matmul_dtype),
                          preferred_element_type=jnp.float32)
            ctx = ctx * pl.reciprocal(denom, approx=False)
            # TODO(synk): nn.Dropout on attention probs is identity in eval mode /
            # p=0, so it is intentionally omitted here.
            ctxs.append(ctx)
        # One lane-dense (S, H) value per branch -> single unmasked store.
        return jnp.concatenate(ctxs, axis=-1)

    for bt in range(block_b):
        r0 = bt * seq_len
        pint = proj_int[r0:r0 + seq_len]          # (S, 3H): [Q_i | K_s | V_s]
        pslot = proj_slot[r0:r0 + seq_len]        # (S, 3H): [K_i | V_i | Q_s]
        mask_add = (1.0 - mask_ref[bt]) * (-10000.0)   # (1, S)

        q_i = pint[:, 0:hidden] * inv_scale
        k_s = pint[:, hidden:2 * hidden]
        v_s = pint[:, 2 * hidden:3 * hidden]
        k_i = pslot[:, 0:hidden]
        v_i = pslot[:, hidden:2 * hidden]
        q_s = pslot[:, 2 * hidden:3 * hidden] * inv_scale

        out_intent_ref[bt] = branch(q_i, k_i, v_i, mask_add).astype(out_intent_ref.dtype)
        out_slot_ref[bt] = branch(q_s, k_s, v_s, mask_add).astype(out_slot_ref.dtype)


def _pick_block_batch(batch, seq_len):
    """Fold enough batch rows per grid step that M ~ 128, but keep >= 2 grid steps
    when the batch allows it (so both v7x TensorCores get work)."""
    best = 1
    for cand in range(1, batch + 1):
        if batch % cand:
            continue
        if cand * seq_len <= max(128, seq_len) and (batch // cand >= 2 or cand == batch):
            best = cand
    if batch // best < 2:                      # prefer >= 2 grid steps if possible
        for cand in range(best, 0, -1):
            if batch % cand == 0 and batch // cand >= 2:
                best = cand
                break
    return best


def i_s_self_attention(intent, slot, mask, weights, biases, *, n_heads,
                       matmul_dtype=jnp.float32):
    """intent/slot (B, S, H), mask (B, S), weights (6, H, H) (in, out) in the order
    [query, key, value, query_slot, key_slot, value_slot], biases (6, H)."""
    B, S, H = intent.shape
    assert H % n_heads == 0
    head_dim = H // n_heads
    H3 = 3 * H

    bt = _pick_block_batch(B, S)
    grid = (B // bt,)

    mask3 = mask.reshape(B, 1, S).astype(jnp.float32)

    # Re-stack the six (H, H) projections into two fused (H, 3H) matmuls.
    #   applied to intent: [query, key_slot, value_slot] -> [Q_i | K_s | V_s]
    #   applied to slot  : [key,   value,    query_slot] -> [K_i | V_i | Q_s]
    w_int = jnp.concatenate([weights[0], weights[4], weights[5]], axis=1)
    w_slot = jnp.concatenate([weights[1], weights[2], weights[3]], axis=1)
    b_int = jnp.concatenate([biases[0], biases[4], biases[5]])[None, :].astype(jnp.float32)
    b_slot = jnp.concatenate([biases[1], biases[2], biases[3]])[None, :].astype(jnp.float32)
    # Halve weight DMA bytes when running the bf16 MXU fast path.
    w_int = w_int.astype(matmul_dtype)
    w_slot = w_slot.astype(matmul_dtype)

    kernel = functools.partial(
        _attention_kernel, n_heads=n_heads, head_dim=head_dim, seq_len=S,
        block_b=bt, matmul_dtype=matmul_dtype)

    grid_spec = pltpu.PrefetchScalarGridSpec(
        num_scalar_prefetch=0,
        grid=grid,
        in_specs=[
            pl.BlockSpec((bt, S, H), lambda b: (b, 0, 0)),   # intent
            pl.BlockSpec((bt, S, H), lambda b: (b, 0, 0)),   # slot
            pl.BlockSpec((bt, 1, S), lambda b: (b, 0, 0)),   # mask
            pl.BlockSpec((H, H3), lambda b: (0, 0)),         # fused intent-side weights
            pl.BlockSpec((1, H3), lambda b: (0, 0)),         # fused intent-side bias
            pl.BlockSpec((H, H3), lambda b: (0, 0)),         # fused slot-side weights
            pl.BlockSpec((1, H3), lambda b: (0, 0)),         # fused slot-side bias
        ],
        out_specs=[
            pl.BlockSpec((bt, S, H), lambda b: (b, 0, 0)),
            pl.BlockSpec((bt, S, H), lambda b: (b, 0, 0)),
        ],
    )

    out_shape = (
        jax.ShapeDtypeStruct((B, S, H), jnp.float32),
        jax.ShapeDtypeStruct((B, S, H), jnp.float32),
    )

    # Only raise the scoped-VMEM limit when the working set exceeds the smallest
    # default (v5e: 16 MiB); cap at v7x physical VMEM (64 MiB).
    act_block = bt * S * H * 4
    w_block = H * H3 * jnp.dtype(matmul_dtype).itemsize
    vmem_est = 2 * 4 * act_block + 2 * 2 * w_block + (2 << 20)
    compiler_kwargs = dict(dimension_semantics=("parallel",))
    if vmem_est > (16 << 20):
        compiler_kwargs["vmem_limit_bytes"] = int(min(2 * vmem_est, 64 << 20))

    return pl.pallas_call(
        kernel,
        grid_spec=grid_spec,
        out_shape=out_shape,
        compiler_params=pltpu.CompilerParams(**compiler_kwargs),
    )(intent, slot, mask3, w_int, b_int, w_slot, b_slot)


def _reference(intent, slot, mask, weights, biases, n_heads):
    """Pure-JAX reference mirroring the PyTorch forward (eval mode)."""
    B, S, H = intent.shape
    hd = H // n_heads
    scale = math.sqrt(float(hd))
    mask_add = (1.0 - mask)[:, None, None, :] * -10000.0   # (B,1,1,S)

    def lin(x, i):
        return x @ weights[i] + biases[i]

    def split(x):  # (B,S,H) -> (B,nH,S,hd)
        return x.reshape(B, S, n_heads, hd).transpose(0, 2, 1, 3)

    def branch(q, k, v):
        scores = jnp.einsum("bhqd,bhkd->bhqk", q, k) / scale + mask_add
        p = jax.nn.softmax(scores, axis=-1)
        ctx = jnp.einsum("bhqk,bhkd->bhqd", p, v)
        return ctx.transpose(0, 2, 1, 3).reshape(B, S, H)

    q_i, k_i, v_i = split(lin(intent, 0)), split(lin(slot, 1)), split(lin(slot, 2))
    q_s, k_s, v_s = split(lin(slot, 3)), split(lin(intent, 4)), split(lin(intent, 5))
    return branch(q_i, k_i, v_i), branch(q_s, k_s, v_s)


if __name__ == "__main__":
    # small shapes consistent with the module
    B, S, H, n_heads = 2, 8, 32, 4

    key = jax.random.PRNGKey(0)
    k_int, k_slot, k_w, k_b = jax.random.split(key, 4)

    intent = jax.random.normal(k_int, (B, S, H), dtype=jnp.float32)
    slot = jax.random.normal(k_slot, (B, S, H), dtype=jnp.float32)

    # mask: first sequence fully valid, second has last 3 positions padded
    mask = jnp.ones((B, S), dtype=jnp.float32)
    mask = mask.at[1, 5:].set(0.0)

    # deterministic synthetic parameters for the six Linear(H, H) layers
    # order: [query, key, value, query_slot, key_slot, value_slot], stored (in, out)
    weights = 0.05 * jax.random.normal(k_w, (6, H, H), dtype=jnp.float32)
    biases = 0.01 * jax.random.normal(k_b, (6, H), dtype=jnp.float32)

    ref_intent, ref_slot = _reference(intent, slot, mask, weights, biases, n_heads)

    # f32 MXU path (exact reference match)
    out_intent, out_slot = i_s_self_attention(
        intent, slot, mask, weights, biases, n_heads=n_heads)
    jax.block_until_ready((out_intent, out_slot))
    assert jnp.allclose(out_intent, ref_intent, atol=1e-4, rtol=1e-4)
    assert jnp.allclose(out_slot, ref_slot, atol=1e-4, rtol=1e-4)

    # bf16 MXU fast path (v6e/v7x); softmax math stays in f32, looser tolerance
    out_intent16, out_slot16 = i_s_self_attention(
        intent, slot, mask, weights, biases, n_heads=n_heads,
        matmul_dtype=jnp.bfloat16)
    jax.block_until_ready((out_intent16, out_slot16))
    assert jnp.allclose(out_intent16, ref_intent, atol=2e-2, rtol=2e-2)
    assert jnp.allclose(out_slot16, ref_slot, atol=2e-2, rtol=2e-2)

    print("KERNEL_OK")
</pallas_src>

<mosaic_0001>
module attributes {stable_mosaic.version = 11 : i64} {
  func.func @_attention_kernel(%arg0: i32, %arg1: memref<1x8x32xf32, #tpu.memory_space<vmem>>, %arg2: memref<1x8x32xf32, #tpu.memory_space<vmem>>, %arg3: memref<1x1x8xf32, #tpu.memory_space<vmem>>, %arg4: memref<32x96xf32, #tpu.memory_space<vmem>>, %arg5: memref<1x96xf32, #tpu.memory_space<vmem>>, %arg6: memref<32x96xf32, #tpu.memory_space<vmem>>, %arg7: memref<1x96xf32, #tpu.memory_space<vmem>>, %arg8: memref<1x8x32xf32, #tpu.memory_space<vmem>>, %arg9: memref<1x8x32xf32, #tpu.memory_space<vmem>>) attributes {dimension_semantics = [#tpu.dimension_semantics<parallel>], iteration_bounds = array<i64: 2>, scalar_prefetch = 0 : i64, scratch_operands = 0 : i64, tpu.core_type = #tpu.core_type<tc>, window_params = [{transform_indices = @transform_0, window_bounds = array<i64: 1, 8, 32>}, {transform_indices = @transform_1, window_bounds = array<i64: 1, 8, 32>}, {transform_indices = @transform_2, window_bounds = array<i64: 1, 1, 8>}, {pipeline_mode = #tpu.pipeline_mode<synchronous>, transform_indices = @transform_3, window_bounds = array<i64: 32, 96>}, {pipeline_mode = #tpu.pipeline_mode<synchronous>, transform_indices = @transform_4, window_bounds = array<i64: 1, 96>}, {pipeline_mode = #tpu.pipeline_mode<synchronous>, transform_indices = @transform_5, window_bounds = array<i64: 32, 96>}, {pipeline_mode = #tpu.pipeline_mode<synchronous>, transform_indices = @transform_6, window_bounds = array<i64: 1, 96>}, {transform_indices = @transform_7, window_bounds = array<i64: 1, 8, 32>}, {transform_indices = @transform_8, window_bounds = array<i64: 1, 8, 32>}]} {
    %c0 = arith.constant 0 : index
    %c0_0 = arith.constant 0 : index
    %c0_1 = arith.constant 0 : index
    %0 = vector.load %arg1[%c0, %c0_0, %c0_1] : memref<1x8x32xf32, #tpu.memory_space<vmem>>, vector<1x8x32xf32>
    %1 = vector.shape_cast %0 : vector<1x8x32xf32> to vector<8x32xf32>
    %c0_2 = arith.constant 0 : index
    %c0_3 = arith.constant 0 : index
    %c0_4 = arith.constant 0 : index
    %2 = vector.load %arg2[%c0_2, %c0_3, %c0_4] : memref<1x8x32xf32, #tpu.memory_space<vmem>>, vector<1x8x32xf32>
    %3 = vector.shape_cast %2 : vector<1x8x32xf32> to vector<8x32xf32>
    %c0_5 = arith.constant 0 : index
    %c0_6 = arith.constant 0 : index
    %4 = vector.load %arg4[%c0_5, %c0_6] : memref<32x96xf32, #tpu.memory_space<vmem>>, vector<32x96xf32>
    %cst = arith.constant dense<0.000000e+00> : vector<8x96xf32>
    %5 = tpu.matmul %1, %4, %cst {dimension_numbers = #tpu.dot_dimension_numbers<[1], [0], [0], [1], [0, 0, 1, 1], [], []>} : vector<8x32xf32>, vector<32x96xf32>, vector<8x96xf32> -> vector<8x96xf32>
    %c0_7 = arith.constant 0 : index
    %c0_8 = arith.constant 0 : index
    %6 = vector.load %arg5[%c0_7, %c0_8] : memref<1x96xf32, #tpu.memory_space<vmem>>, vector<1x96xf32>
    %7 = vector.broadcast %6 : vector<1x96xf32> to vector<8x96xf32>
    %8 = arith.addf %5, %7 : vector<8x96xf32>
    %c0_9 = arith.constant 0 : index
    %c0_10 = arith.constant 0 : index
    %9 = vector.load %arg6[%c0_9, %c0_10] : memref<32x96xf32, #tpu.memory_space<vmem>>, vector<32x96xf32>
    %cst_11 = arith.constant dense<0.000000e+00> : vector<8x96xf32>
    %10 = tpu.matmul %3, %9, %cst_11 {dimension_numbers = #tpu.dot_dimension_numbers<[1], [0], [0], [1], [0, 0, 1, 1], [], []>} : vector<8x32xf32>, vector<32x96xf32>, vector<8x96xf32> -> vector<8x96xf32>
    %c0_12 = arith.constant 0 : index
    %c0_13 = arith.constant 0 : index
    %11 = vector.load %arg7[%c0_12, %c0_13] : memref<1x96xf32, #tpu.memory_space<vmem>>, vector<1x96xf32>
    %12 = vector.broadcast %11 : vector<1x96xf32> to vector<8x96xf32>
    %13 = arith.addf %10, %12 : vector<8x96xf32>
    %c0_14 = arith.constant 0 : index
    %c0_15 = arith.constant 0 : index
    %c0_16 = arith.constant 0 : index
    %14 = vector.load %arg3[%c0_14, %c0_15, %c0_16] : memref<1x1x8xf32, #tpu.memory_space<vmem>>, vector<1x1x8xf32>
    %15 = vector.shape_cast %14 : vector<1x1x8xf32> to vector<1x8xf32>
    %cst_17 = arith.constant 1.000000e+00 : f32
    %16 = vector.broadcast %cst_17 : f32 to vector<1x8xf32>
    %17 = arith.subf %16, %15 : vector<1x8xf32>
    %cst_18 = arith.constant -1.000000e+04 : f32
    %18 = vector.broadcast %cst_18 : f32 to vector<1x8xf32>
    %19 = arith.mulf %17, %18 : vector<1x8xf32>
    %20 = vector.extract_strided_slice %8 {offsets = [0, 0], sizes = [8, 32], strides = [1, 1]} : vector<8x96xf32> to vector<8x32xf32>
    %cst_19 = arith.constant 0.353553385 : f32
    %21 = vector.broadcast %cst_19 : f32 to vector<8x32xf32>
    %22 = arith.mulf %20, %21 : vector<8x32xf32>
    %23 = vector.extract_strided_slice %8 {offsets = [0, 32], sizes = [8, 32], strides = [1, 1]} : vector<8x96xf32> to vector<8x32xf32>
    %24 = vector.extract_strided_slice %8 {offsets = [0, 64], sizes = [8, 32], strides = [1, 1]} : vector<8x96xf32> to vector<8x32xf32>
    %25 = vector.extract_strided_slice %13 {offsets = [0, 0], sizes = [8, 32], strides = [1, 1]} : vector<8x96xf32> to vector<8x32xf32>
    %26 = vector.extract_strided_slice %13 {offsets = [0, 32], sizes = [8, 32], strides = [1, 1]} : vector<8x96xf32> to vector<8x32xf32>
    %27 = vector.extract_strided_slice %13 {offsets = [0, 64], sizes = [8, 32], strides = [1, 1]} : vector<8x96xf32> to vector<8x32xf32>
    %cst_20 = arith.constant 0.353553385 : f32
    %28 = vector.broadcast %cst_20 : f32 to vector<8x32xf32>
    %29 = arith.mulf %27, %28 : vector<8x32xf32>
    %30 = vector.extract_strided_slice %22 {offsets = [0, 0], sizes = [8, 8], strides = [1, 1]} : vector<8x32xf32> to vector<8x8xf32>
    %31 = vector.extract_strided_slice %25 {offsets = [0, 0], sizes = [8, 8], strides = [1, 1]} : vector<8x32xf32> to vector<8x8xf32>
    %32 = vector.extract_strided_slice %26 {offsets = [0, 0], sizes = [8, 8], strides = [1, 1]} : vector<8x32xf32> to vector<8x8xf32>
    %33 = tpu.transpose %31, [1, 0] : vector<8x8xf32> -> vector<8x8xf32>
    %cst_21 = arith.constant dense<0.000000e+00> : vector<8x8xf32>
    %34 = tpu.matmul %30, %33, %cst_21 {dimension_numbers = #tpu.dot_dimension_numbers<[1], [0], [0], [1], [0, 0, 1, 1], [], []>} : vector<8x8xf32>, vector<8x8xf32>, vector<8x8xf32> -> vector<8x8xf32>
    %35 = vector.broadcast %19 : vector<1x8xf32> to vector<8x8xf32>
    %36 = arith.addf %34, %35 : vector<8x8xf32>
    %cst_22 = arith.constant dense<0xFF800000> : vector<8xf32>
    %37 = vector.multi_reduction <maximumf>, %36, %cst_22 [1] : vector<8x8xf32> to vector<8xf32>
    %38 = vector.shape_cast %37 : vector<8xf32> to vector<8x1xf32>
    %39 = vector.broadcast %38 : vector<8x1xf32> to vector<8x8xf32>
    %40 = arith.subf %36, %39 : vector<8x8xf32>
    %41 = math.exp %40 : vector<8x8xf32>
    %cst_23 = arith.constant dense<0.000000e+00> : vector<8xf32>
    %42 = vector.multi_reduction <add>, %41, %cst_23 [1] : vector<8x8xf32> to vector<8xf32>
    %43 = vector.shape_cast %42 : vector<8xf32> to vector<8x1xf32>
    %cst_24 = arith.constant dense<0.000000e+00> : vector<8x8xf32>
    %44 = tpu.matmul %41, %32, %cst_24 {dimension_numbers = #tpu.dot_dimension_numbers<[1], [0], [0], [1], [0, 0, 1, 1], [], []>} : vector<8x8xf32>, vector<8x8xf32>, vector<8x8xf32> -> vector<8x8xf32>
    %45 = tpu.reciprocal %43 : vector<8x1xf32> -> vector<8x1xf32>
    %46 = vector.broadcast %45 : vector<8x1xf32> to vector<8x8xf32>
    %47 = arith.mulf %44, %46 : vector<8x8xf32>
    %48 = vector.extract_strided_slice %22 {offsets = [0, 8], sizes = [8, 8], strides = [1, 1]} : vector<8x32xf32> to vector<8x8xf32>
    %49 = vector.extract_strided_slice %25 {offsets = [0, 8], sizes = [8, 8], strides = [1, 1]} : vector<8x32xf32> to vector<8x8xf32>
    %50 = vector.extract_strided_slice %26 {offsets = [0, 8], sizes = [8, 8], strides = [1, 1]} : vector<8x32xf32> to vector<8x8xf32>
    %51 = tpu.transpose %49, [1, 0] : vector<8x8xf32> -> vector<8x8xf32>
    %cst_25 = arith.constant dense<0.000000e+00> : vector<8x8xf32>
    %52 = tpu.matmul %48, %51, %cst_25 {dimension_numbers = #tpu.dot_dimension_numbers<[1], [0], [0], [1], [0, 0, 1, 1], [], []>} : vector<8x8xf32>, vector<8x8xf32>, vector<8x8xf32> -> vector<8x8xf32>
    %53 = vector.broadcast %19 : vector<1x8xf32> to vector<8x8xf32>
    %54 = arith.addf %52, %53 : vector<8x8xf32>
    %cst_26 = arith.constant dense<0xFF800000> : vector<8xf32>
    %55 = vector.multi_reduction <maximumf>, %54, %cst_26 [1] : vector<8x8xf32> to vector<8xf32>
    %56 = vector.shape_cast %55 : vector<8xf32> to vector<8x1xf32>
    %57 = vector.broadcast %56 : vector<8x1xf32> to vector<8x8xf32>
    %58 = arith.subf %54, %57 : vector<8x8xf32>
    %59 = math.exp %58 : vector<8x8xf32>
    %cst_27 = arith.constant dense<0.000000e+00> : vector<8xf32>
    %60 = vector.multi_reduction <add>, %59, %cst_27 [1] : vector<8x8xf32> to vector<8xf32>
    %61 = vector.shape_cast %60 : vector<8xf32> to vector<8x1xf32>
    %cst_28 = arith.constant dense<0.000000e+00> : vector<8x8xf32>
    %62 = tpu.matmul %59, %50, %cst_28 {dimension_numbers = #tpu.dot_dimension_numbers<[1], [0], [0], [1], [0, 0, 1, 1], [], []>} : vector<8x8xf32>, vector<8x8xf32>, vector<8x8xf32> -> vector<8x8xf32>
    %63 = tpu.reciprocal %61 : vector<8x1xf32> -> vector<8x1xf32>
    %64 = vector.broadcast %63 : vector<8x1xf32> to vector<8x8xf32>
    %65 = arith.mulf %62, %64 : vector<8x8xf32>
    %66 = vector.extract_strided_slice %22 {offsets = [0, 16], sizes = [8, 8], strides = [1, 1]} : vector<8x32xf32> to vector<8x8xf32>
    %67 = vector.extract_strided_slice %25 {offsets = [0, 16], sizes = [8, 8], strides = [1, 1]} : vector<8x32xf32> to vector<8x8xf32>
    %68 = vector.extract_strided_slice %26 {offsets = [0, 16], sizes = [8, 8], strides = [1, 1]} : vector<8x32xf32> to vector<8x8xf32>
    %69 = tpu.transpose %67, [1, 0] : vector<8x8xf32> -> vector<8x8xf32>
    %cst_29 = arith.constant dense<0.000000e+00> : vector<8x8xf32>
    %70 = tpu.matmul %66, %69, %cst_29 {dimension_numbers = #tpu.dot_dimension_numbers<[1], [0], [0], [1], [0, 0, 1, 1], [], []>} : vector<8x8xf32>, vector<8x8xf32>, vector<8x8xf32> -> vector<8x8xf32>
    %71 = vector.broadcast %19 : vector<1x8xf32> to vector<8x8xf32>
    %72 = arith.addf %70, %71 : vector<8x8xf32>
    %cst_30 = arith.constant dense<0xFF800000> : vector<8xf32>
    %73 = vector.multi_reduction <maximumf>, %72, %cst_30 [1] : vector<8x8xf32> to vector<8xf32>
    %74 = vector.shape_cast %73 : vector<8xf32> to vector<8x1xf32>
    %75 = vector.broadcast %74 : vector<8x1xf32> to vector<8x8xf32>
    %76 = arith.subf %72, %75 : vector<8x8xf32>
    %77 = math.exp %76 : vector<8x8xf32>
    %cst_31 = arith.constant dense<0.000000e+00> : vector<8xf32>
    %78 = vector.multi_reduction <add>, %77, %cst_31 [1] : vector<8x8xf32> to vector<8xf32>
    %79 = vector.shape_cast %78 : vector<8xf32> to vector<8x1xf32>
    %cst_32 = arith.constant dense<0.000000e+00> : vector<8x8xf32>
    %80 = tpu.matmul %77, %68, %cst_32 {dimension_numbers = #tpu.dot_dimension_numbers<[1], [0], [0], [1], [0, 0, 1, 1], [], []>} : vector<8x8xf32>, vector<8x8xf32>, vector<8x8xf32> -> vector<8x8xf32>
    %81 = tpu.reciprocal %79 : vector<8x1xf32> -> vector<8x1xf32>
    %82 = vector.broadcast %81 : vector<8x1xf32> to vector<8x8xf32>
    %83 = arith.mulf %80, %82 : vector<8x8xf32>
    %84 = vector.extract_strided_slice %22 {offsets = [0, 24], sizes = [8, 8], strides = [1, 1]} : vector<8x32xf32> to vector<8x8xf32>
    %85 = vector.extract_strided_slice %25 {offsets = [0, 24], sizes = [8, 8], strides = [1, 1]} : vector<8x32xf32> to vector<8x8xf32>
    %86 = vector.extract_strided_slice %26 {offsets = [0, 24], sizes = [8, 8], strides = [1, 1]} : vector<8x32xf32> to vector<8x8xf32>
    %87 = tpu.transpose %85, [1, 0] : vector<8x8xf32> -> vector<8x8xf32>
    %cst_33 = arith.constant dense<0.000000e+00> : vector<8x8xf32>
    %88 = tpu.matmul %84, %87, %cst_33 {dimension_numbers = #tpu.dot_dimension_numbers<[1], [0], [0], [1], [0, 0, 1, 1], [], []>} : vector<8x8xf32>, vector<8x8xf32>, vector<8x8xf32> -> vector<8x8xf32>
    %89 = vector.broadcast %19 : vector<1x8xf32> to vector<8x8xf32>
    %90 = arith.addf %88, %89 : vector<8x8xf32>
    %cst_34 = arith.constant dense<0xFF800000> : vector<8xf32>
    %91 = vector.multi_reduction <maximumf>, %90, %cst_34 [1] : vector<8x8xf32> to vector<8xf32>
    %92 = vector.shape_cast %91 : vector<8xf32> to vector<8x1xf32>
    %93 = vector.broadcast %92 : vector<8x1xf32> to vector<8x8xf32>
    %94 = arith.subf %90, %93 : vector<8x8xf32>
    %95 = math.exp %94 : vector<8x8xf32>
    %cst_35 = arith.constant dense<0.000000e+00> : vector<8xf32>
    %96 = vector.multi_reduction <add>, %95, %cst_35 [1] : vector<8x8xf32> to vector<8xf32>
    %97 = vector.shape_cast %96 : vector<8xf32> to vector<8x1xf32>
    %cst_36 = arith.constant dense<0.000000e+00> : vector<8x8xf32>
    %98 = tpu.matmul %95, %86, %cst_36 {dimension_numbers = #tpu.dot_dimension_numbers<[1], [0], [0], [1], [0, 0, 1, 1], [], []>} : vector<8x8xf32>, vector<8x8xf32>, vector<8x8xf32> -> vector<8x8xf32>
    %99 = tpu.reciprocal %97 : vector<8x1xf32> -> vector<8x1xf32>
    %100 = vector.broadcast %99 : vector<8x1xf32> to vector<8x8xf32>
    %101 = arith.mulf %98, %100 : vector<8x8xf32>
    %102 = tpu.concatenate %47, %65, %83, %101 in 1 : vector<8x8xf32>, vector<8x8xf32>, vector<8x8xf32>, vector<8x8xf32> -> vector<8x32xf32>
    %c0_37 = arith.constant 0 : index
    %c0_38 = arith.constant 0 : index
    %c0_39 = arith.constant 0 : index
    %103 = vector.load %arg8[%c0_37, %c0_38, %c0_39] : memref<1x8x32xf32, #tpu.memory_space<vmem>>, vector<1x8x32xf32>
    %104 = vector.shape_cast %103 : vector<1x8x32xf32> to vector<8x32xf32>
    %105 = vector.shape_cast %102 : vector<8x32xf32> to vector<1x8x32xf32>
    tpu.vector_store %arg8[%c0_37, %c0_38, %c0_39], %105 {strides = array<i32>} : memref<1x8x32xf32, #tpu.memory_space<vmem>>, vector<1x8x32xf32>,
    %106 = vector.extract_strided_slice %29 {offsets = [0, 0], sizes = [8, 8], strides = [1, 1]} : vector<8x32xf32> to vector<8x8xf32>
    %107 = vector.extract_strided_slice %23 {offsets = [0, 0], sizes = [8, 8], strides = [1, 1]} : vector<8x32xf32> to vector<8x8xf32>
    %108 = vector.extract_strided_slice %24 {offsets = [0, 0], sizes = [8, 8], strides = [1, 1]} : vector<8x32xf32> to vector<8x8xf32>
    %109 = tpu.transpose %107, [1, 0] : vector<8x8xf32> -> vector<8x8xf32>
    %cst_40 = arith.constant dense<0.000000e+00> : vector<8x8xf32>
    %110 = tpu.matmul %106, %109, %cst_40 {dimension_numbers = #tpu.dot_dimension_numbers<[1], [0], [0], [1], [0, 0, 1, 1], [], []>} : vector<8x8xf32>, vector<8x8xf32>, vector<8x8xf32> -> vector<8x8xf32>
    %111 = vector.broadcast %19 : vector<1x8xf32> to vector<8x8xf32>
    %112 = arith.addf %110, %111 : vector<8x8xf32>
    %cst_41 = arith.constant dense<0xFF800000> : vector<8xf32>
    %113 = vector.multi_reduction <maximumf>, %112, %cst_41 [1] : vector<8x8xf32> to vector<8xf32>
    %114 = vector.shape_cast %113 : vector<8xf32> to vector<8x1xf32>
    %115 = vector.broadcast %114 : vector<8x1xf32> to vector<8x8xf32>
    %116 = arith.subf %112, %115 : vector<8x8xf32>
    %117 = math.exp %116 : vector<8x8xf32>
    %cst_42 = arith.constant dense<0.000000e+00> : vector<8xf32>
    %118 = vector.multi_reduction <add>, %117, %cst_42 [1] : vector<8x8xf32> to vector<8xf32>
    %119 = vector.shape_cast %118 : vector<8xf32> to vector<8x1xf32>
    %cst_43 = arith.constant dense<0.000000e+00> : vector<8x8xf32>
    %120 = tpu.matmul %117, %108, %cst_43 {dimension_numbers = #tpu.dot_dimension_numbers<[1], [0], [0], [1], [0, 0, 1, 1], [], []>} : vector<8x8xf32>, vector<8x8xf32>, vector<8x8xf32> -> vector<8x8xf32>
    %121 = tpu.reciprocal %119 : vector<8x1xf32> -> vector<8x1xf32>
    %122 = vector.broadcast %121 : vector<8x1xf32> to vector<8x8xf32>
    %123 = arith.mulf %120, %122 : vector<8x8xf32>
    %124 = vector.extract_strided_slice %29 {offsets = [0, 8], sizes = [8, 8], strides = [1, 1]} : vector<8x32xf32> to vector<8x8xf32>
    %125 = vector.extract_strided_slice %23 {offsets = [0, 8], sizes = [8, 8], strides = [1, 1]} : vector<8x32xf32> to vector<8x8xf32>
    %126 = vector.extract_strided_slice %24 {offsets = [0, 8], sizes = [8, 8], strides = [1, 1]} : vector<8x32xf32> to vector<8x8xf32>
    %127 = tpu.transpose %125, [1, 0] : vector<8x8xf32> -> vector<8x8xf32>
    %cst_44 = arith.constant dense<0.000000e+00> : vector<8x8xf32>
    %128 = tpu.matmul %124, %127, %cst_44 {dimension_numbers = #tpu.dot_dimension_numbers<[1], [0], [0], [1], [0, 0, 1, 1], [], []>} : vector<8x8xf32>, vector<8x8xf32>, vector<8x8xf32> -> vector<8x8xf32>
    %129 = vector.broadcast %19 : vector<1x8xf32> to vector<8x8xf32>
    %130 = arith.addf %128, %129 : vector<8x8xf32>
    %cst_45 = arith.constant dense<0xFF800000> : vector<8xf32>
    %131 = vector.multi_reduction <maximumf>, %130, %cst_45 [1] : vector<8x8xf32> to vector<8xf32>
    %132 = vector.shape_cast %131 : vector<8xf32> to vector<8x1xf32>
    %133 = vector.broadcast %132 : vector<8x1xf32> to vector<8x8xf32>
    %134 = arith.subf %130, %133 : vector<8x8xf32>
    %135 = math.exp %134 : vector<8x8xf32>
    %cst_46 = arith.constant dense<0.000000e+00> : vector<8xf32>
    %136 = vector.multi_reduction <add>, %135, %cst_46 [1] : vector<8x8xf32> to vector<8xf32>
    %137 = vector.shape_cast %136 : vector<8xf32> to vector<8x1xf32>
    %cst_47 = arith.constant dense<0.000000e+00> : vector<8x8xf32>
    %138 = tpu.matmul %135, %126, %cst_47 {dimension_numbers = #tpu.dot_dimension_numbers<[1], [0], [0], [1], [0, 0, 1, 1], [], []>} : vector<8x8xf32>, vector<8x8xf32>, vector<8x8xf32> -> vector<8x8xf32>
    %139 = tpu.reciprocal %137 : vector<8x1xf32> -> vector<8x1xf32>
    %140 = vector.broadcast %139 : vector<8x1xf32> to vector<8x8xf32>
    %141 = arith.mulf %138, %140 : vector<8x8xf32>
    %142 = vector.extract_strided_slice %29 {offsets = [0, 16], sizes = [8, 8], strides = [1, 1]} : vector<8x32xf32> to vector<8x8xf32>
    %143 = vector.extract_strided_slice %23 {offsets = [0, 16], sizes = [8, 8], strides = [1, 1]} : vector<8x32xf32> to vector<8x8xf32>
    %144 = vector.extract_strided_slice %24 {offsets = [0, 16], sizes = [8, 8], strides = [1, 1]} : vector<8x32xf32> to vector<8x8xf32>
    %145 = tpu.transpose %143, [1, 0] : vector<8x8xf32> -> vector<8x8xf32>
    %cst_48 = arith.constant dense<0.000000e+00> : vector<8x8xf32>
    %146 = tpu.matmul %142, %145, %cst_48 {dimension_numbers = #tpu.dot_dimension_numbers<[1], [0], [0], [1], [0, 0, 1, 1], [], []>} : vector<8x8xf32>, vector<8x8xf32>, vector<8x8xf32> -> vector<8x8xf32>
    %147 = vector.broadcast %19 : vector<1x8xf32> to vector<8x8xf32>
    %148 = arith.addf %146, %147 : vector<8x8xf32>
    %cst_49 = arith.constant dense<0xFF800000> : vector<8xf32>
    %149 = vector.multi_reduction <maximumf>, %148, %cst_49 [1] : vector<8x8xf32> to vector<8xf32>
    %150 = vector.shape_cast %149 : vector<8xf32> to vector<8x1xf32>
    %151 = vector.broadcast %150 : vector<8x1xf32> to vector<8x8xf32>
    %152 = arith.subf %148, %151 : vector<8x8xf32>
    %153 = math.exp %152 : vector<8x8xf32>
    %cst_50 = arith.constant dense<0.000000e+00> : vector<8xf32>
    %154 = vector.multi_reduction <add>, %153, %cst_50 [1] : vector<8x8xf32> to vector<8xf32>
    %155 = vector.shape_cast %154 : vector<8xf32> to vector<8x1xf32>
    %cst_51 = arith.constant dense<0.000000e+00> : vector<8x8xf32>
    %156 = tpu.matmul %153, %144, %cst_51 {dimension_numbers = #tpu.dot_dimension_numbers<[1], [0], [0], [1], [0, 0, 1, 1], [], []>} : vector<8x8xf32>, vector<8x8xf32>, vector<8x8xf32> -> vector<8x8xf32>
    %157 = tpu.reciprocal %155 : vector<8x1xf32> -> vector<8x1xf32>
    %158 = vector.broadcast %157 : vector<8x1xf32> to vector<8x8xf32>
    %159 = arith.mulf %156, %158 : vector<8x8xf32>
    %160 = vector.extract_strided_slice %29 {offsets = [0, 24], sizes = [8, 8], strides = [1, 1]} : vector<8x32xf32> to vector<8x8xf32>
    %161 = vector.extract_strided_slice %23 {offsets = [0, 24], sizes = [8, 8], strides = [1, 1]} : vector<8x32xf32> to vector<8x8xf32>
    %162 = vector.extract_strided_slice %24 {offsets = [0, 24], sizes = [8, 8], strides = [1, 1]} : vector<8x32xf32> to vector<8x8xf32>
    %163 = tpu.transpose %161, [1, 0] : vector<8x8xf32> -> vector<8x8xf32>
    %cst_52 = arith.constant dense<0.000000e+00> : vector<8x8xf32>
    %164 = tpu.matmul %160, %163, %cst_52 {dimension_numbers = #tpu.dot_dimension_numbers<[1], [0], [0], [1], [0, 0, 1, 1], [], []>} : vector<8x8xf32>, vector<8x8xf32>, vector<8x8xf32> -> vector<8x8xf32>
    %165 = vector.broadcast %19 : vector<1x8xf32> to vector<8x8xf32>
    %166 = arith.addf %164, %165 : vector<8x8xf32>
    %cst_53 = arith.constant dense<0xFF800000> : vector<8xf32>
    %167 = vector.multi_reduction <maximumf>, %166, %cst_53 [1] : vector<8x8xf32> to vector<8xf32>
    %168 = vector.shape_cast %167 : vector<8xf32> to vector<8x1xf32>
    %169 = vector.broadcast %168 : vector<8x1xf32> to vector<8x8xf32>
    %170 = arith.subf %166, %169 : vector<8x8xf32>
    %171 = math.exp %170 : vector<8x8xf32>
    %cst_54 = arith.constant dense<0.000000e+00> : vector<8xf32>
    %172 = vector.multi_reduction <add>, %171, %cst_54 [1] : vector<8x8xf32> to vector<8xf32>
    %173 = vector.shape_cast %172 : vector<8xf32> to vector<8x1xf32>
    %cst_55 = arith.constant dense<0.000000e+00> : vector<8x8xf32>
    %174 = tpu.matmul %171, %162, %cst_55 {dimension_numbers = #tpu.dot_dimension_numbers<[1], [0], [0], [1], [0, 0, 1, 1], [], []>} : vector<8x8xf32>, vector<8x8xf32>, vector<8x8xf32> -> vector<8x8xf32>
    %175 = tpu.reciprocal %173 : vector<8x1xf32> -> vector<8x1xf32>
    %176 = vector.broadcast %175 : vector<8x1xf32> to vector<8x8xf32>
    %177 = arith.mulf %174, %176 : vector<8x8xf32>
    %178 = tpu.concatenate %123, %141, %159, %177 in 1 : vector<8x8xf32>, vector<8x8xf32>, vector<8x8xf32>, vector<8x8xf32> -> vector<8x32xf32>
    %c0_56 = arith.constant 0 : index
    %c0_57 = arith.constant 0 : index
    %c0_58 = arith.constant 0 : index
    %179 = vector.load %arg9[%c0_56, %c0_57, %c0_58] : memref<1x8x32xf32, #tpu.memory_space<vmem>>, vector<1x8x32xf32>
    %180 = vector.shape_cast %179 : vector<1x8x32xf32> to vector<8x32xf32>
    %181 = vector.shape_cast %178 : vector<8x32xf32> to vector<1x8x32xf32>
    tpu.vector_store %arg9[%c0_56, %c0_57, %c0_58], %181 {strides = array<i32>} : memref<1x8x32xf32, #tpu.memory_space<vmem>>, vector<1x8x32xf32>,
    return
  }
  func.func @transform_0(%arg0: i32) -> (i32, i32, i32) {
    %c0_i32 = arith.constant 0 : i32
    %c0_i32_0 = arith.constant 0 : i32
    %c0_i32_1 = arith.constant 0 : i32
    return %arg0, %c0_i32, %c0_i32_0 : i32, i32, i32
  }
  func.func @transform_1(%arg0: i32) -> (i32, i32, i32) {
    %c0_i32 = arith.constant 0 : i32
    %c0_i32_0 = arith.constant 0 : i32
    %c0_i32_1 = arith.constant 0 : i32
    return %arg0, %c0_i32, %c0_i32_0 : i32, i32, i32
  }
  func.func @transform_2(%arg0: i32) -> (i32, i32, i32) {
    %c0_i32 = arith.constant 0 : i32
    %c0_i32_0 = arith.constant 0 : i32
    %c0_i32_1 = arith.constant 0 : i32
    return %arg0, %c0_i32, %c0_i32_0 : i32, i32, i32
  }
  func.func @transform_3(%arg0: i32) -> (i32, i32) {
    %c0_i32 = arith.constant 0 : i32
    %c0_i32_0 = arith.constant 0 : i32
    %c0_i32_1 = arith.constant 0 : i32
    return %c0_i32, %c0_i32_0 : i32, i32
  }
  func.func @transform_4(%arg0: i32) -> (i32, i32) {
    %c0_i32 = arith.constant 0 : i32
    %c0_i32_0 = arith.constant 0 : i32
    %c0_i32_1 = arith.constant 0 : i32
    return %c0_i32, %c0_i32_0 : i32, i32
  }
  func.func @transform_5(%arg0: i32) -> (i32, i32) {
    %c0_i32 = arith.constant 0 : i32
    %c0_i32_0 = arith.constant 0 : i32
    %c0_i32_1 = arith.constant 0 : i32
    return %c0_i32, %c0_i32_0 : i32, i32
  }
  func.func @transform_6(%arg0: i32) -> (i32, i32) {
    %c0_i32 = arith.constant 0 : i32
    %c0_i32_0 = arith.constant 0 : i32
    %c0_i32_1 = arith.constant 0 : i32
    return %c0_i32, %c0_i32_0 : i32, i32
  }
  func.func @transform_7(%arg0: i32) -> (i32, i32, i32) {
    %c0_i32 = arith.constant 0 : i32
    %c0_i32_0 = arith.constant 0 : i32
    %c0_i32_1 = arith.constant 0 : i32
    return %arg0, %c0_i32, %c0_i32_0 : i32, i32, i32
  }
  func.func @transform_8(%arg0: i32) -> (i32, i32, i32) {
    %c0_i32 = arith.constant 0 : i32
    %c0_i32_0 = arith.constant 0 : i32
    %c0_i32_1 = arith.constant 0 : i32
    return %arg0, %c0_i32, %c0_i32_0 : i32, i32, i32
  }
}

</mosaic_0001>

<llo_original>
// kernel: tpu_custom_call.1
$region0: #{tpu_custom_call.1}
  #allocation0 [shape = 'u32[]', space=smem, size = 0x4, offset = 0x4, fixed_abs, tag = 'smem constant byte address 0x4 - core index']
  #allocation1 [shape = 'u32[144,128]{1,0:T(1,128)}', space=vmem, size = 0x12000, scoped, tag = 'internal scratch']
  %s0 = inlined_call_operand.hbm [shape: f32[2,8,32], index: 0, kind: input, shape index: {}]
  %s1 = inlined_call_operand.hbm [shape: f32[2,8,32], index: 1, kind: input, shape index: {}]
  %s2 = inlined_call_operand.vmem [shape: f32[2,1,8], index: 2, kind: input, shape index: {}]
  %s3 = inlined_call_operand.hbm [shape: f32[32,96], index: 3, kind: input, shape index: {}]
  %s4 = inlined_call_operand.vmem [shape: f32[1,96], index: 4, kind: input, shape index: {}]
  %s5 = inlined_call_operand.hbm [shape: f32[32,96], index: 5, kind: input, shape index: {}]
  %s6 = inlined_call_operand.vmem [shape: f32[1,96], index: 6, kind: input, shape index: {}]
  %s7 = inlined_call_operand.hbm [shape: f32[2,8,32], index: 7, kind: output, shape index: {0}]
  %s8 = inlined_call_operand.hbm [shape: f32[2,8,32], index: 8, kind: output, shape index: {1}]
  %9 = xla_tuple %s7, %s8
  %s10 = sld [smem:[#allocation0]]
  $region85: #{tpu_custom_call.1} parent=0
    _
  %s12 = ssub.s32 1, %s10
  %s13 = scalar_select 0, %s12, %s10
  $region1: #{tpu_custom_call.1} parent=0
    #allocation2 [shape = 'u8[8192]{0}', space=vmem, size = 0x2000, scoped, tag = 'input window, operand 0']
    #allocation3 [shape = 's32[2]{0}', space=sflag, size = 0x8, scoped, tag = 'scoped memory for tpu_custom_call.1']
    #allocation4 [shape = 's32[2]{0}', space=sflag, size = 0x8, scoped, tag = 'scoped memory for tpu_custom_call.1']
    #allocation5 [shape = 'u8[8192]{0}', space=vmem, size = 0x2000, scoped, tag = 'input window, operand 1']
    #allocation6 [shape = 's32[2]{0}', space=sflag, size = 0x8, scoped, tag = 'scoped memory for tpu_custom_call.1']
    #allocation7 [shape = 'u8[16384]{0}', space=vmem, size = 0x4000, scoped, tag = 'input window, operand 3, single buffered']
    #allocation8 [shape = 'u8[16384]{0}', space=vmem, size = 0x4000, scoped, tag = 'input window, operand 5, single buffered']
    #allocation9 [shape = 's32[1]{0}', space=sflag, size = 0x4, scoped, tag = 'scoped memory for tpu_custom_call.1']
    #allocation10 [shape = 'u8[8192]{0}', space=vmem, size = 0x2000, scoped, tag = 'output window, operand 0']
    #allocation11 [shape = 'u8[8192]{0}', space=vmem, size = 0x2000, scoped, tag = 'output window, operand 1']
    #allocation12 [shape = 's32[2]{0}', space=sflag, size = 0x8, scoped, tag = 'scoped memory for tpu_custom_call.1']
    %14 = vsyncpa [#allocation3], 0
    %s15 = scalar_lea.sflag [#allocation3], 1
    %16 = vsyncpa %s15, 0
    %17 = vsyncpa [#allocation6], 0
    %s18 = scalar_lea.sflag [#allocation6], 1
    %19 = vsyncpa %s18, 0
    %20 = vsyncpa [#allocation9], 0
    %21 = vsyncpa [#allocation4], 0
    %s22 = scalar_lea.sflag [#allocation4], 1
    %23 = vsyncpa %s22, 0
    %24 = vsyncpa [#allocation12], 0
    %s25 = scalar_lea.sflag [#allocation12], 1
    %26 = vsyncpa %s25, 0
    loop: start=0, step=1, limit=4
    $region2: #{tpu_custom_call.1} parent=1 // loop_pre_header
      _
    $region3: #{tpu_custom_call.1} parent=1 // loop_header
      %s28 = sphi 0, %s32
      %p29 = scmp.ge.s32.totalorder %s28, 4
      %s38 = sphi 0, %s40
      %s41 = sphi 0, %s38
      %s42 = sphi 0, %s41
      %s58 = sphi 0, %s42
      %s64 = sphi 0, %s66
      %s67 = sphi 0, %s64
      %s68 = sphi 0, %s67
      %s84 = sphi 0, %s68
      %s90 = sphi 0, %s92
      %s93 = sphi 0, %s90
      %s94 = sphi 0, %s93
      %s110 = sphi 0, %s94
      %s114 = sphi 0, %s114
      %s116 = sphi 0, %s114
      %s117 = sphi 0, %s116
      %s131 = sphi 0, %s117
      %s135 = sphi 0, %s135
      %s137 = sphi 0, %s135
      %s138 = sphi 0, %s137
      %s152 = sphi 0, %s138
      %s156 = sphi 0, %s156
      %s158 = sphi 0, %s156
      %s159 = sphi 0, %s158
      %s173 = sphi 0, %s159
      %s177 = sphi 0, %s177
      %s179 = sphi 0, %s177
      %s180 = sphi 0, %s179
      %s194 = sphi 0, %s180
      %s200 = sphi 0, %s202
      %s203 = sphi 0, %s200
      %s204 = sphi 0, %s203
      %s220 = sphi 0, %s204
      %s226 = sphi 0, %s228
      %s229 = sphi 0, %s226
      %s230 = sphi 0, %s229
      %s246 = sphi 0, %s230
    $region4: #{tpu_custom_call.1} parent=1 // loop_header_branch
      %31 = sbr.rel (%p29) target = $region8
    $region5: #{tpu_custom_call.1} parent=1 // loop_body
      %s33 = ssub.s32 %s28, 1
      %s34 = ssub.s32 %s28, 2
      %s35 = sadd.s32 %s28, 1
      %s36 = ssub.s32 %s28, %s35
      %p37 = scmp.eq.s32.totalorder %s36, 0
      %s39 = sadd.s32 %s38, 1
      %s40 = scalar_select %p37, %s38, %s39
      %p43 = pneg %p37
      %p44 = scmp.eq.s32.totalorder %s28, 1
      %p45 = por %p43, %p44
      %p46 = scmp.ne.s32.totalorder %s38, %s41
      %p47 = scmp.eq.s32.totalorder %s28, 0
      %p48 = por %p46, %p47
      %p49 = scmp.ne.s32.totalorder %s38, %s41
      %p50 = scmp.eq.s32.totalorder %s33, 1
      %p51 = por %p49, %p50
      %p52 = scmp.ne.s32.totalorder %s41, %s42
      %p53 = scmp.eq.s32.totalorder %s33, 0
      %p54 = por %p52, %p53
      %p55 = scmp.ne.s32.totalorder %s41, %s42
      %p56 = scmp.eq.s32.totalorder %s34, 1
      %p57 = por %p55, %p56
      %p59 = scmp.ne.s32.totalorder %s42, %s58
      %p60 = scmp.eq.s32.totalorder %s34, 0
      %p61 = por %p59, %p60
      %s62 = ssub.s32 %s28, %s35
      %p63 = scmp.eq.s32.totalorder %s62, 0
      %s65 = sadd.s32 %s64, 1
      %s66 = scalar_select %p63, %s64, %s65
      %p69 = pneg %p63
      %p70 = scmp.eq.s32.totalorder %s28, 1
      %p71 = por %p69, %p70
      %p72 = scmp.ne.s32.totalorder %s64, %s67
      %p73 = scmp.eq.s32.totalorder %s28, 0
      %p74 = por %p72, %p73
      %p75 = scmp.ne.s32.totalorder %s64, %s67
      %p76 = scmp.eq.s32.totalorder %s33, 1
      %p77 = por %p75, %p76
      %p78 = scmp.ne.s32.totalorder %s67, %s68
      %p79 = scmp.eq.s32.totalorder %s33, 0
      %p80 = por %p78, %p79
      %p81 = scmp.ne.s32.totalorder %s67, %s68
      %p82 = scmp.eq.s32.totalorder %s34, 1
      %p83 = por %p81, %p82
      %p85 = scmp.ne.s32.totalorder %s68, %s84
      %p86 = scmp.eq.s32.totalorder %s34, 0
      %p87 = por %p85, %p86
      %s88 = ssub.s32 %s28, %s35
      %p89 = scmp.eq.s32.totalorder %s88, 0
      %s91 = sadd.s32 %s90, 1
      %s92 = scalar_select %p89, %s90, %s91
      %p95 = pneg %p89
      %p96 = scmp.eq.s32.totalorder %s28, 1
      %p97 = por %p95, %p96
      %p98 = scmp.ne.s32.totalorder %s90, %s93
      %p99 = scmp.eq.s32.totalorder %s28, 0
      %p100 = por %p98, %p99
      %p101 = scmp.ne.s32.totalorder %s90, %s93
      %p102 = scmp.eq.s32.totalorder %s33, 1
      %p103 = por %p101, %p102
      %p104 = scmp.ne.s32.totalorder %s93, %s94
      %p105 = scmp.eq.s32.totalorder %s33, 0
      %p106 = por %p104, %p105
      %p107 = scmp.ne.s32.totalorder %s93, %s94
      %p108 = scmp.eq.s32.totalorder %s34, 1
      %p109 = por %p107, %p108
      %p111 = scmp.ne.s32.totalorder %s94, %s110
      %p112 = scmp.eq.s32.totalorder %s34, 0
      %p113 = por %p111, %p112
      %s115 = sadd.s32 %s114, 1
      %p118 = scmp.eq.s32.totalorder %s28, 1
      %p119 = scmp.ne.s32.totalorder %s114, %s116
      %p120 = scmp.eq.s32.totalorder %s28, 0
      %p121 = por %p119, %p120
      %p122 = scmp.ne.s32.totalorder %s114, %s116
      %p123 = scmp.eq.s32.totalorder %s33, 1
      %p124 = por %p122, %p123
      %p125 = scmp.ne.s32.totalorder %s116, %s117
      %p126 = scmp.eq.s32.totalorder %s33, 0
      %p127 = por %p125, %p126
      %p128 = scmp.ne.s32.totalorder %s116, %s117
      %p129 = scmp.eq.s32.totalorder %s34, 1
      %p130 = por %p128, %p129
      %p132 = scmp.ne.s32.totalorder %s117, %s131
      %p133 = scmp.eq.s32.totalorder %s34, 0
      %p134 = por %p132, %p133
      %s136 = sadd.s32 %s135, 1
      %p139 = scmp.eq.s32.totalorder %s28, 1
      %p140 = scmp.ne.s32.totalorder %s135, %s137
      %p141 = scmp.eq.s32.totalorder %s28, 0
      %p142 = por %p140, %p141
      %p143 = scmp.ne.s32.totalorder %s135, %s137
      %p144 = scmp.eq.s32.totalorder %s33, 1
      %p145 = por %p143, %p144
      %p146 = scmp.ne.s32.totalorder %s137, %s138
      %p147 = scmp.eq.s32.totalorder %s33, 0
      %p148 = por %p146, %p147
      %p149 = scmp.ne.s32.totalorder %s137, %s138
      %p150 = scmp.eq.s32.totalorder %s34, 1
      %p151 = por %p149, %p150
      %p153 = scmp.ne.s32.totalorder %s138, %s152
      %p154 = scmp.eq.s32.totalorder %s34, 0
      %p155 = por %p153, %p154
      %s157 = sadd.s32 %s156, 1
      %p160 = scmp.eq.s32.totalorder %s28, 1
      %p161 = scmp.ne.s32.totalorder %s156, %s158
      %p162 = scmp.eq.s32.totalorder %s28, 0
      %p163 = por %p161, %p162
      %p164 = scmp.ne.s32.totalorder %s156, %s158
      %p165 = scmp.eq.s32.totalorder %s33, 1
      %p166 = por %p164, %p165
      %p167 = scmp.ne.s32.totalorder %s158, %s159
      %p168 = scmp.eq.s32.totalorder %s33, 0
      %p169 = por %p167, %p168
      %p170 = scmp.ne.s32.totalorder %s158, %s159
      %p171 = scmp.eq.s32.totalorder %s34, 1
      %p172 = por %p170, %p171
      %p174 = scmp.ne.s32.totalorder %s159, %s173
      %p175 = scmp.eq.s32.totalorder %s34, 0
      %p176 = por %p174, %p175
      %s178 = sadd.s32 %s177, 1
      %p181 = scmp.eq.s32.totalorder %s28, 1
      %p182 = scmp.ne.s32.totalorder %s177, %s179
      %p183 = scmp.eq.s32.totalorder %s28, 0
      %p184 = por %p182, %p183
      %p185 = scmp.ne.s32.totalorder %s177, %s179
      %p186 = scmp.eq.s32.totalorder %s33, 1
      %p187 = por %p185, %p186
      %p188 = scmp.ne.s32.totalorder %s179, %s180
      %p189 = scmp.eq.s32.totalorder %s33, 0
      %p190 = por %p188, %p189
      %p191 = scmp.ne.s32.totalorder %s179, %s180
      %p192 = scmp.eq.s32.totalorder %s34, 1
      %p193 = por %p191, %p192
      %p195 = scmp.ne.s32.totalorder %s180, %s194
      %p196 = scmp.eq.s32.totalorder %s34, 0
      %p197 = por %p195, %p196
      %s198 = ssub.s32 %s28, %s35
      %p199 = scmp.eq.s32.totalorder %s198, 0
      %s201 = sadd.s32 %s200, 1
      %s202 = scalar_select %p199, %s200, %s201
      %p205 = pneg %p199
      %p206 = scmp.eq.s32.totalorder %s28, 1
      %p207 = por %p205, %p206
      %p208 = scmp.ne.s32.totalorder %s200, %s203
      %p209 = scmp.eq.s32.totalorder %s28, 0
      %p210 = por %p208, %p209
      %p211 = scmp.ne.s32.totalorder %s200, %s203
      %p212 = scmp.eq.s32.totalorder %s33, 1
      %p213 = por %p211, %p212
      %p214 = scmp.ne.s32.totalorder %s203, %s204
      %p215 = scmp.eq.s32.totalorder %s33, 0
      %p216 = por %p214, %p215
      %p217 = scmp.ne.s32.totalorder %s203, %s204
      %p218 = scmp.eq.s32.totalorder %s34, 1
      %p219 = por %p217, %p218
      %p221 = scmp.ne.s32.totalorder %s204, %s220
      %p222 = scmp.eq.s32.totalorder %s34, 0
      %p223 = por %p221, %p222
      %s224 = ssub.s32 %s28, %s35
      %p225 = scmp.eq.s32.totalorder %s224, 0
      %s227 = sadd.s32 %s226, 1
      %s228 = scalar_select %p225, %s226, %s227
      %p231 = pneg %p225
      %p232 = scmp.eq.s32.totalorder %s28, 1
      %p233 = por %p231, %p232
      %p234 = scmp.ne.s32.totalorder %s226, %s229
      %p235 = scmp.eq.s32.totalorder %s28, 0
      %p236 = por %p234, %p235
      %p237 = scmp.ne.s32.totalorder %s226, %s229
      %p238 = scmp.eq.s32.totalorder %s33, 1
      %p239 = por %p237, %p238
      %p240 = scmp.ne.s32.totalorder %s229, %s230
      %p241 = scmp.eq.s32.totalorder %s33, 0
      %p242 = por %p240, %p241
      %p243 = scmp.ne.s32.totalorder %s229, %s230
      %p244 = scmp.eq.s32.totalorder %s34, 1
      %p245 = por %p243, %p244
      %p247 = scmp.ne.s32.totalorder %s230, %s246
      %p248 = scmp.eq.s32.totalorder %s34, 0
      %p249 = por %p247, %p248
      %p250 = scmp.le.s32.totalorder 1, %s28
      %p251 = scmp.lt.s32.totalorder %s28, 3
      %p252 = pnand %p250, %p251
      %p253 = pneg %p252
      // Predicated region
      $region9: #{tpu_custom_call.1} parent=5 // pred_check
        _
      $region10: #{tpu_custom_call.1} parent=5 // pred_check_branch
        %255 = sbr.rel (%p252) target = $region12
      $region11: #{tpu_custom_call.1} parent=5 // pred_region
        %s256 = ssub.s32 %s28, 1
        // Predicated region
        $region13: #{tpu_custom_call.1} parent=11 // pred_check
          %p257 = pneg %p127
        $region14: #{tpu_custom_call.1} parent=11 // pred_check_branch
          %259 = sbr.rel (%p257) target = $region16
        $region15: #{tpu_custom_call.1} parent=11 // pred_region
          %s261 = ssub.s32 512, 512
          %262 = vsyncadd [#allocation6], %s261
          %s263 = sshll.u32 [#allocation7], 4
          %s264 = int_to_ptr.vmem [resolvable:$true] %s263
          %269 = dma.hbm_to_vmem [thread:$0]  %s3, 512, %s264, [#allocation6], 128, 128, 8
        $region16: #{tpu_custom_call.1} parent=11 // pred_fallthru
          _
        // Predicated region
        $region17: #{tpu_custom_call.1} parent=11 // pred_check
          %p270 = pneg %p148
        $region18: #{tpu_custom_call.1} parent=11 // pred_check_branch
          %272 = sbr.rel (%p270) target = $region20
        $region19: #{tpu_custom_call.1} parent=11 // pred_region
          _
        $region20: #{tpu_custom_call.1} parent=11 // pred_fallthru
          _
        // Predicated region
        $region21: #{tpu_custom_call.1} parent=11 // pred_check
          %p273 = pneg %p169
        $region22: #{tpu_custom_call.1} parent=11 // pred_check_branch
          %275 = sbr.rel (%p273) target = $region24
        $region23: #{tpu_custom_call.1} parent=11 // pred_region
          %s277 = ssub.s32 512, 512
          %278 = vsyncadd [#allocation9], %s277
          %s279 = sshll.u32 [#allocation8], 4
          %s280 = int_to_ptr.vmem [resolvable:$true] %s279
          %285 = dma.hbm_to_vmem [thread:$0]  %s5, 512, %s280, [#allocation9], 128, 128, 8
        $region24: #{tpu_custom_call.1} parent=11 // pred_fallthru
          _
        // Predicated region
        $region25: #{tpu_custom_call.1} parent=11 // pred_check
          %p286 = pneg %p190
        $region26: #{tpu_custom_call.1} parent=11 // pred_check_branch
          %288 = sbr.rel (%p286) target = $region28
        $region27: #{tpu_custom_call.1} parent=11 // pred_region
          _
        $region28: #{tpu_custom_call.1} parent=11 // pred_fallthru
          _
      $region12: #{tpu_custom_call.1} parent=5 // pred_fallthru
        _
      %p289 = scmp.lt.s32.totalorder %s28, 2
      // Predicated region
      $region29: #{tpu_custom_call.1} parent=5 // pred_check
        %p290 = pneg %p289
      $region30: #{tpu_custom_call.1} parent=5 // pred_check_branch
        %292 = sbr.rel (%p290) target = $region32
      $region31: #{tpu_custom_call.1} parent=5 // pred_region
        // Predicated region
        $region33: #{tpu_custom_call.1} parent=31 // pred_check
          %p293 = pneg %p48
        $region34: #{tpu_custom_call.1} parent=31 // pred_check_branch
          %295 = sbr.rel (%p293) target = $region36
        $region35: #{tpu_custom_call.1} parent=31 // pred_region
          %s296 = sand.u32 %s38, 1
          %s297 = scalar_lea.sflag [#allocation3], %s296
          %s298 = sand.u32 %s38, 1
          %s299 = smul.addr %s298, 8
          %s300 = scalar_lea.vmem [#allocation2], %s299
          %s302 = ssub.s32 128, 128
          %303 = vsyncadd %s297, %s302
          %s304 = smul.addr %s28, 128
          %s305 = scalar_lea.hbm %s0, %s304
          %s307 = sshll.u32 %s300, 4
          %s308 = int_to_ptr.vmem [resolvable:$true] %s307
          %310 = dma.hbm_to_vmem [thread:$0]  %s305, 128, %s308, %s297
        $region36: #{tpu_custom_call.1} parent=31 // pred_fallthru
          _
        // Predicated region
        $region37: #{tpu_custom_call.1} parent=31 // pred_check
          %p311 = pneg %p74
        $region38: #{tpu_custom_call.1} parent=31 // pred_check_branch
          %313 = sbr.rel (%p311) target = $region40
        $region39: #{tpu_custom_call.1} parent=31 // pred_region
          %s314 = sand.u32 %s28, 1
          %s315 = scalar_lea.sflag [#allocation6], %s314
          %s316 = sand.u32 %s64, 1
          %s317 = smul.addr %s316, 8
          %s318 = scalar_lea.vmem [#allocation5], %s317
          %s320 = ssub.s32 128, 128
          %321 = vsyncadd %s315, %s320
          %s322 = smul.addr %s28, 128
          %s323 = scalar_lea.hbm %s1, %s322
          %s325 = sshll.u32 %s318, 4
          %s326 = int_to_ptr.vmem [resolvable:$true] %s325
          %328 = dma.hbm_to_vmem [thread:$0]  %s323, 128, %s326, %s315
        $region40: #{tpu_custom_call.1} parent=31 // pred_fallthru
          _
        // Predicated region
        $region41: #{tpu_custom_call.1} parent=31 // pred_check
          %p329 = pneg %p100
        $region42: #{tpu_custom_call.1} parent=31 // pred_check_branch
          %331 = sbr.rel (%p329) target = $region44
        $region43: #{tpu_custom_call.1} parent=31 // pred_region
          %p332 = scmp.lt.s32.totalorder %s28, 1
          %s333 = scalar_select %p332, %s28, 1
          %s334 = scalar_lea.vmem %s2, %s333
        $region44: #{tpu_custom_call.1} parent=31 // pred_fallthru
          _
      $region32: #{tpu_custom_call.1} parent=5 // pred_fallthru
        _
      %p335 = scmp.le.s32.totalorder 1, %s28
      %p336 = scmp.lt.s32.totalorder %s28, 3
      %p337 = pnand %p335, %p336
      %p338 = pneg %p337
      // Predicated region
      $region45: #{tpu_custom_call.1} parent=5 // pred_check
        _
      $region46: #{tpu_custom_call.1} parent=5 // pred_check_branch
        %340 = sbr.rel (%p337) target = $region48
      $region47: #{tpu_custom_call.1} parent=5 // pred_region
        %s341 = ssub.s32 %s28, 1
        %s342 = sand.u32 %s41, 1
        %s343 = scalar_lea.sflag [#allocation3], %s342
        %s344 = sand.u32 %s41, 1
        %s345 = smul.addr %s344, 8
        %s346 = scalar_lea.vmem [#allocation2], %s345
        // Predicated region
        $region49: #{tpu_custom_call.1} parent=47 // pred_check
          %p347 = pneg %p54
        $region50: #{tpu_custom_call.1} parent=47 // pred_check_branch
          %349 = sbr.rel (%p347) target = $region52
        $region51: #{tpu_custom_call.1} parent=47 // pred_region
          %350 = dma.done %s343, 128
        $region52: #{tpu_custom_call.1} parent=47 // pred_fallthru
          _
        %s351 = sand.u32 %s33, 1
        %s352 = scalar_lea.sflag [#allocation6], %s351
        %s353 = sand.u32 %s67, 1
        %s354 = smul.addr %s353, 8
        %s355 = scalar_lea.vmem [#allocation5], %s354
        // Predicated region
        $region53: #{tpu_custom_call.1} parent=47 // pred_check
          %p356 = pneg %p80
        $region54: #{tpu_custom_call.1} parent=47 // pred_check_branch
          %358 = sbr.rel (%p356) target = $region56
        $region55: #{tpu_custom_call.1} parent=47 // pred_region
          %359 = dma.done %s352, 128
        $region56: #{tpu_custom_call.1} parent=47 // pred_fallthru
          _
        // Predicated region
        $region57: #{tpu_custom_call.1} parent=47 // pred_check
          %p360 = pneg %p127
        $region58: #{tpu_custom_call.1} parent=47 // pred_check_branch
          %362 = sbr.rel (%p360) target = $region60
        $region59: #{tpu_custom_call.1} parent=47 // pred_region
          %363 = dma.done [#allocation6], 512
        $region60: #{tpu_custom_call.1} parent=47 // pred_fallthru
          _
        // Predicated region
        $region61: #{tpu_custom_call.1} parent=47 // pred_check
          %p364 = pneg %p169
        $region62: #{tpu_custom_call.1} parent=47 // pred_check_branch
          %366 = sbr.rel (%p364) target = $region64
        $region63: #{tpu_custom_call.1} parent=47 // pred_region
          %367 = dma.done [#allocation9], 512
        $region64: #{tpu_custom_call.1} parent=47 // pred_fallthru
          _
        %s368 = sand.u32 %s41, 1
        %s369 = scalar_lea.sflag [#allocation3], %s368
        %s370 = sand.u32 %s41, 1
        %s371 = smul.addr %s370, 8
        %s372 = scalar_lea.vmem [#allocation2], %s371
        %p373 = pneg %p54
        %p374 = pneg %p51
        %s375 = sand.u32 %s33, 1
        %s376 = scalar_lea.sflag [#allocation6], %s375
        %s377 = sand.u32 %s67, 1
        %s378 = smul.addr %s377, 8
        %s379 = scalar_lea.vmem [#allocation5], %s378
        %p380 = pneg %p80
        %p381 = pneg %p77
        %p382 = scmp.lt.s32.totalorder %s33, 1
        %s383 = scalar_select %p382, %s33, 1
        %s384 = scalar_lea.vmem %s2, %s383
        %p385 = pneg %p106
        %p386 = pneg %p103
        %p387 = pneg %p127
        %p388 = pneg %p124
        %p389 = pneg %p148
        %p390 = pneg %p145
        %p391 = pneg %p169
        %p392 = pneg %p166
        %p393 = pneg %p190
        %p394 = pneg %p187
        %p395 = pneg %p216
        %p396 = pneg %p213
        %s397 = sand.u32 %s203, 1
        %s398 = scalar_lea.sflag [#allocation4], %s397
        %s399 = sand.u32 %s203, 1
        %s400 = smul.addr %s399, 8
        %s401 = scalar_lea.vmem [#allocation10], %s400
        %p402 = pneg %p242
        %p403 = pneg %p239
        %s404 = sand.u32 %s229, 1
        %s405 = scalar_lea.sflag [#allocation12], %s404
        %s406 = sand.u32 %s229, 1
        %s407 = smul.addr %s406, 8
        %s408 = scalar_lea.vmem [#allocation11], %s407
        %p409 = scmp.lt.s32.totalorder %s33, 1
        %s410 = scalar_select %p409, %s33, 1
        %s411 = scalar_lea.vmem %s2, %s410
        %v412 = vld [vmem:[%s346] sm:$0xff]
        %v413 = vld [vmem:[%s355] sm:$0xff]
        %v414 = vld [vmem:[#allocation7] sm:$0xff]
        %v415 = vld [vmem:[#allocation7 + $0x8] sm:$0xff]
        %v416 = vld [vmem:[#allocation7 + $0x10] sm:$0xff]
        %v417 = vld [vmem:[#allocation7 + $0x18] sm:$0xff]
        %v418 = vld [vmem:[%s4] sm:$0x1]
        %v420 = vlaneseq
        %v421 = vshrl.u32 %v420, 7
        %v422 = vsub.s32 0, %v421
        %v423 = vrot.slane %v418, %v422
        %vm425 = vcmask 261120
        %v427 = vsel %vm425, %v412, 0
        %429 = vmatprep.subr.mxu0 0.0
        %430 = vmatpush1.msra.mxu0 %v414
        %431 = vmatprep.subr.mxu0 0.0
        %432 = vmatpush1.msra.mxu0 %v415
        %433 = vmatprep.subr.mxu0 0.0
        %434 = vmatpush1.msra.mxu0 %v416
        %435 = vmatprep.subr.mxu0 0.0
        %436 = vmatpush1.msra.mxu0 %v417
        %437 = vmatprep.subr.mxu0 0.0
        %438 = vmatpush1.msra.mxu0 0.0
        %439 = vmatprep.subr.mxu0 0.0
        %440 = vmatpush1.msra.mxu0 0.0
        %441 = vmatprep.subr.mxu0 0.0
        %442 = vmatpush1.msra.mxu0 0.0
        %443 = vmatprep.subr.mxu0 0.0
        %444 = vmatpush1.msra.mxu0 0.0
        %445 = vmatprep.subr.mxu0 0.0
        %446 = vmatpush1.msra.mxu0 0.0
        %447 = vmatprep.subr.mxu0 0.0
        %448 = vmatpush1.msra.mxu0 0.0
        %449 = vmatprep.subr.mxu0 0.0
        %450 = vmatpush1.msra.mxu0 0.0
        %451 = vmatprep.subr.mxu0 0.0
        %452 = vmatpush1.msra.mxu0 0.0
        %453 = vmatprep.subr.mxu0 0.0
        %454 = vmatpush1.msra.mxu0 0.0
        %455 = vmatprep.subr.mxu0 0.0
        %456 = vmatpush1.msra.mxu0 0.0
        %457 = vmatprep.subr.mxu0 0.0
        %458 = vmatpush1.msra.mxu0 0.0
        %459 = vmatprep.subr.mxu0 0.0
        %460 = vmatpush1.msra.mxu0 0.0
        %461 = vmatprep.subr.mxu0 0.0
        %462 = vmatpush1.msra.mxu0 0.0
        %463 = vmatprep.subr.mxu0 0.0
        %464 = vmatpush1.msra.mxu0 0.0
        %465 = vmatprep.subr.mxu0 0.0
        %466 = vmatpush1.msra.mxu0 0.0
        %467 = vmatprep.subr.mxu0 0.0
        %468 = vmatpush1.msra.mxu0 0.0
        %469 = vmatprep.subr.mxu0 0.0
        %470 = vmatpush1.msra.mxu0 0.0
        %471 = vmatprep.subr.mxu0 0.0
        %472 = vmatpush1.msra.mxu0 0.0
        %473 = vmatprep.subr.mxu0 0.0
        %474 = vmatpush1.msra.mxu0 0.0
        %475 = vmatprep.subr.mxu0 0.0
        %476 = vmatpush1.msra.mxu0 0.0
        %477 = vmatprep.subr.mxu0 0.0
        %478 = vmatpush1.msra.mxu0 0.0
        %479 = vmatprep.subr.mxu0 0.0
        %480 = vmatpush1.msra.mxu0 0.0
        %481 = vmatprep.subr.mxu0 0.0
        %482 = vmatpush1.msra.mxu0 0.0
        %483 = vmatprep.subr.mxu0 0.0
        %484 = vmatpush1.msra.mxu0 0.0
        %485 = vmatprep.subr.mxu0 0.0
        %486 = vmatpush1.msra.mxu0 0.0
        %487 = vmatprep.subr.mxu0 0.0
        %488 = vmatpush1.msra.mxu0 0.0
        %489 = vmatprep.subr.mxu0 0.0
        %490 = vmatpush1.msra.mxu0 0.0
        %491 = vmatprep.subr.mxu0 0.0
        %492 = vmatpush1.msra.mxu0 0.0
        %493 = vmatprep.mubr.f32.mxu0 0.0
        %494 = vmatmul.mubr.f32.gmra.mrb[0].mxu0 %v427
        %v495 = vpop.f32.mrb[0].mxu0
        %v496 = vadd.f32 %v423, %v495
        %v497 = vpop.f32.mrb[0].mxu0
        %498 = vdwg.mxu0
        %v499 = vld [vmem:[#allocation8] sm:$0xff]
        %v500 = vld [vmem:[#allocation8 + $0x8] sm:$0xff]
        %v501 = vld [vmem:[#allocation8 + $0x10] sm:$0xff]
        %v502 = vld [vmem:[#allocation8 + $0x18] sm:$0xff]
        %v503 = vld [vmem:[%s6] sm:$0x1]
        %v505 = vlaneseq
        %v506 = vshrl.u32 %v505, 7
        %v507 = vsub.s32 0, %v506
        %v508 = vrot.slane %v503, %v507
        %v511 = vsel %vm425, %v413, 0
        %513 = vmatprep.subr.mxu0 0.0
        %514 = vmatpush1.msra.mxu0 %v499
        %515 = vmatprep.subr.mxu0 0.0
        %516 = vmatpush1.msra.mxu0 %v500
        %517 = vmatprep.subr.mxu0 0.0
        %518 = vmatpush1.msra.mxu0 %v501
        %519 = vmatprep.subr.mxu0 0.0
        %520 = vmatpush1.msra.mxu0 %v502
        %521 = vmatprep.subr.mxu0 0.0
        %522 = vmatpush1.msra.mxu0 0.0
        %523 = vmatprep.subr.mxu0 0.0
        %524 = vmatpush1.msra.mxu0 0.0
        %525 = vmatprep.subr.mxu0 0.0
        %526 = vmatpush1.msra.mxu0 0.0
        %527 = vmatprep.subr.mxu0 0.0
        %528 = vmatpush1.msra.mxu0 0.0
        %529 = vmatprep.subr.mxu0 0.0
        %530 = vmatpush1.msra.mxu0 0.0
        %531 = vmatprep.subr.mxu0 0.0
        %532 = vmatpush1.msra.mxu0 0.0
        %533 = vmatprep.subr.mxu0 0.0
        %534 = vmatpush1.msra.mxu0 0.0
        %535 = vmatprep.subr.mxu0 0.0
        %536 = vmatpush1.msra.mxu0 0.0
        %537 = vmatprep.subr.mxu0 0.0
        %538 = vmatpush1.msra.mxu0 0.0
        %539 = vmatprep.subr.mxu0 0.0
        %540 = vmatpush1.msra.mxu0 0.0
        %541 = vmatprep.subr.mxu0 0.0
        %542 = vmatpush1.msra.mxu0 0.0
        %543 = vmatprep.subr.mxu0 0.0
        %544 = vmatpush1.msra.mxu0 0.0
        %545 = vmatprep.subr.mxu0 0.0
        %546 = vmatpush1.msra.mxu0 0.0
        %547 = vmatprep.subr.mxu0 0.0
        %548 = vmatpush1.msra.mxu0 0.0
        %549 = vmatprep.subr.mxu0 0.0
        %550 = vmatpush1.msra.mxu0 0.0
        %551 = vmatprep.subr.mxu0 0.0
        %552 = vmatpush1.msra.mxu0 0.0
        %553 = vmatprep.subr.mxu0 0.0
        %554 = vmatpush1.msra.mxu0 0.0
        %555 = vmatprep.subr.mxu0 0.0
        %556 = vmatpush1.msra.mxu0 0.0
        %557 = vmatprep.subr.mxu0 0.0
        %558 = vmatpush1.msra.mxu0 0.0
        %559 = vmatprep.subr.mxu0 0.0
        %560 = vmatpush1.msra.mxu0 0.0
        %561 = vmatprep.subr.mxu0 0.0
        %562 = vmatpush1.msra.mxu0 0.0
        %563 = vmatprep.subr.mxu0 0.0
        %564 = vmatpush1.msra.mxu0 0.0
        %565 = vmatprep.subr.mxu0 0.0
        %566 = vmatpush1.msra.mxu0 0.0
        %567 = vmatprep.subr.mxu0 0.0
        %568 = vmatpush1.msra.mxu0 0.0
        %569 = vmatprep.subr.mxu0 0.0
        %570 = vmatpush1.msra.mxu0 0.0
        %571 = vmatprep.subr.mxu0 0.0
        %572 = vmatpush1.msra.mxu0 0.0
        %573 = vmatprep.subr.mxu0 0.0
        %574 = vmatpush1.msra.mxu0 0.0
        %575 = vmatprep.subr.mxu0 0.0
        %576 = vmatpush1.msra.mxu0 0.0
        %577 = vmatprep.mubr.f32.mxu0 0.0
        %578 = vmatmul.mubr.f32.gmra.mrb[0].mxu0 %v511
        %v579 = vpop.f32.mrb[0].mxu0
        %v580 = vadd.f32 %v508, %v579
        %v581 = vpop.f32.mrb[0].mxu0
        %582 = vdwg.mxu0
        %v583 = vld [vmem:[%s411] sm:$0x1]
        %v584 = vsub.f32 1.0, %v583
        %v585 = vmul.f32 %v584, -10000.0
        %v586 = vmul.f32 %v496, 0.35355338
        %v587 = vmul.f32 %v580, 0.35355338
        %v589 = vlaneseq
        %v590 = vshrl.u32 %v589, 7
        %v591 = vsub.s32 0, %v590
        %v592 = vrot.slane %v585, %v591
        %vm594 = vcmask 64512
        %v596 = vsel %vm594, %v586, 0
        %v599 = vsel %vm594, %v580, 0
        %601 = vmatprep.subr.mxu0 0.0
        %602 = vmatpush1.xpose.msra.mxu0 %v599
        %603 = vmatprep.subr.mxu0 0.0
        %604 = vmatpush1.xpose.msra.mxu0 0.0
        %605 = vmatprep.subr.mxu0 0.0
        %606 = vmatpush1.xpose.msra.mxu0 0.0
        %607 = vmatprep.subr.mxu0 0.0
        %608 = vmatpush1.xpose.msra.mxu0 0.0
        %609 = vmatprep.subr.mxu0 0.0
        %610 = vmatpush1.xpose.msra.mxu0 0.0
        %611 = vmatprep.subr.mxu0 0.0
        %612 = vmatpush1.xpose.msra.mxu0 0.0
        %613 = vmatprep.subr.mxu0 0.0
        %614 = vmatpush1.xpose.msra.mxu0 0.0
        %615 = vmatprep.subr.mxu0 0.0
        %616 = vmatpush1.xpose.msra.mxu0 0.0
        %617 = vmatprep.subr.mxu0 0.0
        %618 = vmatpush1.xpose.msra.mxu0 0.0
        %619 = vmatprep.subr.mxu0 0.0
        %620 = vmatpush1.xpose.msra.mxu0 0.0
        %621 = vmatprep.subr.mxu0 0.0
        %622 = vmatpush1.xpose.msra.mxu0 0.0
        %623 = vmatprep.subr.mxu0 0.0
        %624 = vmatpush1.xpose.msra.mxu0 0.0
        %625 = vmatprep.subr.mxu0 0.0
        %626 = vmatpush1.xpose.msra.mxu0 0.0
        %627 = vmatprep.subr.mxu0 0.0
        %628 = vmatpush1.xpose.msra.mxu0 0.0
        %629 = vmatprep.subr.mxu0 0.0
        %630 = vmatpush1.xpose.msra.mxu0 0.0
        %631 = vmatprep.subr.mxu0 0.0
        %632 = vmatpush1.xpose.msra.mxu0 0.0
        %633 = vmatprep.subr.mxu0 0.0
        %634 = vmatpush1.xpose.msra.mxu0 0.0
        %635 = vmatprep.subr.mxu0 0.0
        %636 = vmatpush1.xpose.msra.mxu0 0.0
        %637 = vmatprep.subr.mxu0 0.0
        %638 = vmatpush1.xpose.msra.mxu0 0.0
        %639 = vmatprep.subr.mxu0 0.0
        %640 = vmatpush1.xpose.msra.mxu0 0.0
        %641 = vmatprep.subr.mxu0 0.0
        %642 = vmatpush1.xpose.msra.mxu0 0.0
        %643 = vmatprep.subr.mxu0 0.0
        %644 = vmatpush1.xpose.msra.mxu0 0.0
        %645 = vmatprep.subr.mxu0 0.0
        %646 = vmatpush1.xpose.msra.mxu0 0.0
        %647 = vmatprep.subr.mxu0 0.0
        %648 = vmatpush1.xpose.msra.mxu0 0.0
        %649 = vmatprep.subr.mxu0 0.0
        %650 = vmatpush1.xpose.msra.mxu0 0.0
        %651 = vmatprep.subr.mxu0 0.0
        %652 = vmatpush1.xpose.msra.mxu0 0.0
        %653 = vmatprep.subr.mxu0 0.0
        %654 = vmatpush1.xpose.msra.mxu0 0.0
        %655 = vmatprep.subr.mxu0 0.0
        %656 = vmatpush1.xpose.msra.mxu0 0.0
        %657 = vmatprep.subr.mxu0 0.0
        %658 = vmatpush1.xpose.msra.mxu0 0.0
        %659 = vmatprep.subr.mxu0 0.0
        %660 = vmatpush1.xpose.msra.mxu0 0.0
        %661 = vmatprep.subr.mxu0 0.0
        %662 = vmatpush1.xpose.msra.mxu0 0.0
        %663 = vmatprep.subr.mxu0 0.0
        %664 = vmatpush1.xpose.msra.mxu0 0.0
        %665 = vmatprep.mubr.f32.mxu0 0.0
        %666 = vmatmul.mubr.f32.gmra.mrb[0].mxu0 %v596
        %v667 = vpop.f32.mrb[0].mxu0
        %v668 = vadd.f32 %v592, %v667
        %v669 = vpop.f32.mrb[0].mxu0
        %670 = vdwg.mxu0
        %v671 = vsel %vm594, %v668, -inf
        %672 = vmax.xlane.f32.xlu0 %v671
        %v673 = vpop.xlane.xlu0 %672
        %v674 = vsub.f32 %v668, %v673
        %v675 = vmul.f32 %v674, 1.442695
        %v676 = vpow.pop %v675
        %v677 = vsel %vm594, %v676, 0.0
        %678 = vadd.xlane.f32.xlu0 %v677
        %v679 = vpop.xlane.xlu0 %678
        %680 = vrot.lane.b32.xlu0 %v580, 96
        %v681 = vpop.permute.xlu0 %680
        %v684 = vsel %vm594, %v676, 0
        %686 = vmatprep.subr.mxu0 0.0
        %687 = vmatpush1.msra.mxu0 %v681
        %688 = vmatprep.subr.mxu0 0.0
        %689 = vmatpush1.msra.mxu0 0.0
        %690 = vmatprep.subr.mxu0 0.0
        %691 = vmatpush1.msra.mxu0 0.0
        %692 = vmatprep.subr.mxu0 0.0
        %693 = vmatpush1.msra.mxu0 0.0
        %694 = vmatprep.subr.mxu0 0.0
        %695 = vmatpush1.msra.mxu0 0.0
        %696 = vmatprep.subr.mxu0 0.0
        %697 = vmatpush1.msra.mxu0 0.0
        %698 = vmatprep.subr.mxu0 0.0
        %699 = vmatpush1.msra.mxu0 0.0
        %700 = vmatprep.subr.mxu0 0.0
        %701 = vmatpush1.msra.mxu0 0.0
        %702 = vmatprep.subr.mxu0 0.0
        %703 = vmatpush1.msra.mxu0 0.0
        %704 = vmatprep.subr.mxu0 0.0
        %705 = vmatpush1.msra.mxu0 0.0
        %706 = vmatprep.subr.mxu0 0.0
        %707 = vmatpush1.msra.mxu0 0.0
        %708 = vmatprep.subr.mxu0 0.0
        %709 = vmatpush1.msra.mxu0 0.0
        %710 = vmatprep.subr.mxu0 0.0
        %711 = vmatpush1.msra.mxu0 0.0
        %712 = vmatprep.subr.mxu0 0.0
        %713 = vmatpush1.msra.mxu0 0.0
        %714 = vmatprep.subr.mxu0 0.0
        %715 = vmatpush1.msra.mxu0 0.0
        %716 = vmatprep.subr.mxu0 0.0
        %717 = vmatpush1.msra.mxu0 0.0
        %718 = vmatprep.subr.mxu0 0.0
        %719 = vmatpush1.msra.mxu0 0.0
        %720 = vmatprep.subr.mxu0 0.0
        %721 = vmatpush1.msra.mxu0 0.0
        %722 = vmatprep.subr.mxu0 0.0
        %723 = vmatpush1.msra.mxu0 0.0
        %724 = vmatprep.subr.mxu0 0.0
        %725 = vmatpush1.msra.mxu0 0.0
        %726 = vmatprep.subr.mxu0 0.0
        %727 = vmatpush1.msra.mxu0 0.0
        %728 = vmatprep.subr.mxu0 0.0
        %729 = vmatpush1.msra.mxu0 0.0
        %730 = vmatprep.subr.mxu0 0.0
        %731 = vmatpush1.msra.mxu0 0.0
        %732 = vmatprep.subr.mxu0 0.0
        %733 = vmatpush1.msra.mxu0 0.0
        %734 = vmatprep.subr.mxu0 0.0
        %735 = vmatpush1.msra.mxu0 0.0
        %736 = vmatprep.subr.mxu0 0.0
        %737 = vmatpush1.msra.mxu0 0.0
        %738 = vmatprep.subr.mxu0 0.0
        %739 = vmatpush1.msra.mxu0 0.0
        %740 = vmatprep.subr.mxu0 0.0
        %741 = vmatpush1.msra.mxu0 0.0
        %742 = vmatprep.subr.mxu0 0.0
        %743 = vmatpush1.msra.mxu0 0.0
        %744 = vmatprep.subr.mxu0 0.0
        %745 = vmatpush1.msra.mxu0 0.0
        %746 = vmatprep.subr.mxu0 0.0
        %747 = vmatpush1.msra.mxu0 0.0
        %748 = vmatprep.subr.mxu0 0.0
        %749 = vmatpush1.msra.mxu0 0.0
        %750 = vmatprep.mubr.f32.mxu0 0.0
        %751 = vmatmul.mubr.f32.gmra.mrb[0].mxu0 %v684
        %v752 = vpop.f32.mrb[0].mxu0
        %v753 = vadd.f32 0.0, %v752
        %v754 = vpop.f32.mrb[0].mxu0
        %755 = vdwg.mxu0
        %v756 = vrcp.pop %v679
        %v757 = vmul.f32 %v753, %v756
        %758 = vrot.lane.b32.xlu0 %v586, 120
        %v759 = vpop.permute.xlu0 %758
        %760 = vrot.lane.b32.xlu0 %v580, 120
        %v761 = vpop.permute.xlu0 %760
        %v762 = vsel %vm594, %v759, 0
        %v764 = vsel %vm594, %v761, 0
        %766 = vmatprep.subr.mxu0 0.0
        %767 = vmatpush1.xpose.msra.mxu0 %v764
        %768 = vmatprep.subr.mxu0 0.0
        %769 = vmatpush1.xpose.msra.mxu0 0.0
        %770 = vmatprep.subr.mxu0 0.0
        %771 = vmatpush1.xpose.msra.mxu0 0.0
        %772 = vmatprep.subr.mxu0 0.0
        %773 = vmatpush1.xpose.msra.mxu0 0.0
        %774 = vmatprep.subr.mxu0 0.0
        %775 = vmatpush1.xpose.msra.mxu0 0.0
        %776 = vmatprep.subr.mxu0 0.0
        %777 = vmatpush1.xpose.msra.mxu0 0.0
        %778 = vmatprep.subr.mxu0 0.0
        %779 = vmatpush1.xpose.msra.mxu0 0.0
        %780 = vmatprep.subr.mxu0 0.0
        %781 = vmatpush1.xpose.msra.mxu0 0.0
        %782 = vmatprep.subr.mxu0 0.0
        %783 = vmatpush1.xpose.msra.mxu0 0.0
        %784 = vmatprep.subr.mxu0 0.0
        %785 = vmatpush1.xpose.msra.mxu0 0.0
        %786 = vmatprep.subr.mxu0 0.0
        %787 = vmatpush1.xpose.msra.mxu0 0.0
        %788 = vmatprep.subr.mxu0 0.0
        %789 = vmatpush1.xpose.msra.mxu0 0.0
        %790 = vmatprep.subr.mxu0 0.0
        %791 = vmatpush1.xpose.msra.mxu0 0.0
        %792 = vmatprep.subr.mxu0 0.0
        %793 = vmatpush1.xpose.msra.mxu0 0.0
        %794 = vmatprep.subr.mxu0 0.0
        %795 = vmatpush1.xpose.msra.mxu0 0.0
        %796 = vmatprep.subr.mxu0 0.0
        %797 = vmatpush1.xpose.msra.mxu0 0.0
        %798 = vmatprep.subr.mxu0 0.0
        %799 = vmatpush1.xpose.msra.mxu0 0.0
        %800 = vmatprep.subr.mxu0 0.0
        %801 = vmatpush1.xpose.msra.mxu0 0.0
        %802 = vmatprep.subr.mxu0 0.0
        %803 = vmatpush1.xpose.msra.mxu0 0.0
        %804 = vmatprep.subr.mxu0 0.0
        %805 = vmatpush1.xpose.msra.mxu0 0.0
        %806 = vmatprep.subr.mxu0 0.0
        %807 = vmatpush1.xpose.msra.mxu0 0.0
        %808 = vmatprep.subr.mxu0 0.0
        %809 = vmatpush1.xpose.msra.mxu0 0.0
        %810 = vmatprep.subr.mxu0 0.0
        %811 = vmatpush1.xpose.msra.mxu0 0.0
        %812 = vmatprep.subr.mxu0 0.0
        %813 = vmatpush1.xpose.msra.mxu0 0.0
        %814 = vmatprep.subr.mxu0 0.0
        %815 = vmatpush1.xpose.msra.mxu0 0.0
        %816 = vmatprep.subr.mxu0 0.0
        %817 = vmatpush1.xpose.msra.mxu0 0.0
        %818 = vmatprep.subr.mxu0 0.0
        %819 = vmatpush1.xpose.msra.mxu0 0.0
        %820 = vmatprep.subr.mxu0 0.0
        %821 = vmatpush1.xpose.msra.mxu0 0.0
        %822 = vmatprep.subr.mxu0 0.0
        %823 = vmatpush1.xpose.msra.mxu0 0.0
        %824 = vmatprep.subr.mxu0 0.0
        %825 = vmatpush1.xpose.msra.mxu0 0.0
        %826 = vmatprep.subr.mxu0 0.0
        %827 = vmatpush1.xpose.msra.mxu0 0.0
        %828 = vmatprep.subr.mxu0 0.0
        %829 = vmatpush1.xpose.msra.mxu0 0.0
        %830 = vmatprep.mubr.f32.mxu0 0.0
        %831 = vmatmul.mubr.f32.gmra.mrb[0].mxu0 %v762
        %v832 = vpop.f32.mrb[0].mxu0
        %v833 = vadd.f32 %v592, %v832
        %v834 = vpop.f32.mrb[0].mxu0
        %835 = vdwg.mxu0
        %v836 = vsel %vm594, %v833, -inf
        %837 = vmax.xlane.f32.xlu0 %v836
        %v838 = vpop.xlane.xlu0 %837
        %v839 = vsub.f32 %v833, %v838
        %v840 = vmul.f32 %v839, 1.442695
        %v841 = vpow.pop %v840
        %v842 = vsel %vm594, %v841, 0.0
        %843 = vadd.xlane.f32.xlu0 %v842
        %v844 = vpop.xlane.xlu0 %843
        %845 = vrot.lane.b32.xlu0 %v580, 88
        %v846 = vpop.permute.xlu0 %845
        %v849 = vsel %vm594, %v841, 0
        %851 = vmatprep.subr.mxu0 0.0
        %852 = vmatpush1.msra.mxu0 %v846
        %853 = vmatprep.subr.mxu0 0.0
        %854 = vmatpush1.msra.mxu0 0.0
        %855 = vmatprep.subr.mxu0 0.0
        %856 = vmatpush1.msra.mxu0 0.0
        %857 = vmatprep.subr.mxu0 0.0
        %858 = vmatpush1.msra.mxu0 0.0
        %859 = vmatprep.subr.mxu0 0.0
        %860 = vmatpush1.msra.mxu0 0.0
        %861 = vmatprep.subr.mxu0 0.0
        %862 = vmatpush1.msra.mxu0 0.0
        %863 = vmatprep.subr.mxu0 0.0
        %864 = vmatpush1.msra.mxu0 0.0
        %865 = vmatprep.subr.mxu0 0.0
        %866 = vmatpush1.msra.mxu0 0.0
        %867 = vmatprep.subr.mxu0 0.0
        %868 = vmatpush1.msra.mxu0 0.0
        %869 = vmatprep.subr.mxu0 0.0
        %870 = vmatpush1.msra.mxu0 0.0
        %871 = vmatprep.subr.mxu0 0.0
        %872 = vmatpush1.msra.mxu0 0.0
        %873 = vmatprep.subr.mxu0 0.0
        %874 = vmatpush1.msra.mxu0 0.0
        %875 = vmatprep.subr.mxu0 0.0
        %876 = vmatpush1.msra.mxu0 0.0
        %877 = vmatprep.subr.mxu0 0.0
        %878 = vmatpush1.msra.mxu0 0.0
        %879 = vmatprep.subr.mxu0 0.0
        %880 = vmatpush1.msra.mxu0 0.0
        %881 = vmatprep.subr.mxu0 0.0
        %882 = vmatpush1.msra.mxu0 0.0
        %883 = vmatprep.subr.mxu0 0.0
        %884 = vmatpush1.msra.mxu0 0.0
        %885 = vmatprep.subr.mxu0 0.0
        %886 = vmatpush1.msra.mxu0 0.0
        %887 = vmatprep.subr.mxu0 0.0
        %888 = vmatpush1.msra.mxu0 0.0
        %889 = vmatprep.subr.mxu0 0.0
        %890 = vmatpush1.msra.mxu0 0.0
        %891 = vmatprep.subr.mxu0 0.0
        %892 = vmatpush1.msra.mxu0 0.0
        %893 = vmatprep.subr.mxu0 0.0
        %894 = vmatpush1.msra.mxu0 0.0
        %895 = vmatprep.subr.mxu0 0.0
        %896 = vmatpush1.msra.mxu0 0.0
        %897 = vmatprep.subr.mxu0 0.0
        %898 = vmatpush1.msra.mxu0 0.0
        %899 = vmatprep.subr.mxu0 0.0
        %900 = vmatpush1.msra.mxu0 0.0
        %901 = vmatprep.subr.mxu0 0.0
        %902 = vmatpush1.msra.mxu0 0.0
        %903 = vmatprep.subr.mxu0 0.0
        %904 = vmatpush1.msra.mxu0 0.0
        %905 = vmatprep.subr.mxu0 0.0
        %906 = vmatpush1.msra.mxu0 0.0
        %907 = vmatprep.subr.mxu0 0.0
        %908 = vmatpush1.msra.mxu0 0.0
        %909 = vmatprep.subr.mxu0 0.0
        %910 = vmatpush1.msra.mxu0 0.0
        %911 = vmatprep.subr.mxu0 0.0
        %912 = vmatpush1.msra.mxu0 0.0
        %913 = vmatprep.subr.mxu0 0.0
        %914 = vmatpush1.msra.mxu0 0.0
        %915 = vmatprep.mubr.f32.mxu0 0.0
        %916 = vmatmul.mubr.f32.gmra.mrb[0].mxu0 %v849
        %v917 = vpop.f32.mrb[0].mxu0
        %v918 = vadd.f32 0.0, %v917
        %v919 = vpop.f32.mrb[0].mxu0
        %920 = vdwg.mxu0
        %v921 = vrcp.pop %v844
        %v922 = vmul.f32 %v918, %v921
        %923 = vrot.lane.b32.xlu0 %v586, 112
        %v924 = vpop.permute.xlu0 %923
        %925 = vrot.lane.b32.xlu0 %v580, 112
        %v926 = vpop.permute.xlu0 %925
        %v927 = vsel %vm594, %v924, 0
        %v929 = vsel %vm594, %v926, 0
        %931 = vmatprep.subr.mxu0 0.0
        %932 = vmatpush1.xpose.msra.mxu0 %v929
        %933 = vmatprep.subr.mxu0 0.0
        %934 = vmatpush1.xpose.msra.mxu0 0.0
        %935 = vmatprep.subr.mxu0 0.0
        %936 = vmatpush1.xpose.msra.mxu0 0.0
        %937 = vmatprep.subr.mxu0 0.0
        %938 = vmatpush1.xpose.msra.mxu0 0.0
        %939 = vmatprep.subr.mxu0 0.0
        %940 = vmatpush1.xpose.msra.mxu0 0.0
        %941 = vmatprep.subr.mxu0 0.0
        %942 = vmatpush1.xpose.msra.mxu0 0.0
        %943 = vmatprep.subr.mxu0 0.0
        %944 = vmatpush1.xpose.msra.mxu0 0.0
        %945 = vmatprep.subr.mxu0 0.0
        %946 = vmatpush1.xpose.msra.mxu0 0.0
        %947 = vmatprep.subr.mxu0 0.0
        %948 = vmatpush1.xpose.msra.mxu0 0.0
        %949 = vmatprep.subr.mxu0 0.0
        %950 = vmatpush1.xpose.msra.mxu0 0.0
        %951 = vmatprep.subr.mxu0 0.0
        %952 = vmatpush1.xpose.msra.mxu0 0.0
        %953 = vmatprep.subr.mxu0 0.0
        %954 = vmatpush1.xpose.msra.mxu0 0.0
        %955 = vmatprep.subr.mxu0 0.0
        %956 = vmatpush1.xpose.msra.mxu0 0.0
        %957 = vmatprep.subr.mxu0 0.0
        %958 = vmatpush1.xpose.msra.mxu0 0.0
        %959 = vmatprep.subr.mxu0 0.0
        %960 = vmatpush1.xpose.msra.mxu0 0.0
        %961 = vmatprep.subr.mxu0 0.0
        %962 = vmatpush1.xpose.msra.mxu0 0.0
        %963 = vmatprep.subr.mxu0 0.0
        %964 = vmatpush1.xpose.msra.mxu0 0.0
        %965 = vmatprep.subr.mxu0 0.0
        %966 = vmatpush1.xpose.msra.mxu0 0.0
        %967 = vmatprep.subr.mxu0 0.0
        %968 = vmatpush1.xpose.msra.mxu0 0.0
        %969 = vmatprep.subr.mxu0 0.0
        %970 = vmatpush1.xpose.msra.mxu0 0.0
        %971 = vmatprep.subr.mxu0 0.0
        %972 = vmatpush1.xpose.msra.mxu0 0.0
        %973 = vmatprep.subr.mxu0 0.0
        %974 = vmatpush1.xpose.msra.mxu0 0.0
        %975 = vmatprep.subr.mxu0 0.0
        %976 = vmatpush1.xpose.msra.mxu0 0.0
        %977 = vmatprep.subr.mxu0 0.0
        %978 = vmatpush1.xpose.msra.mxu0 0.0
        %979 = vmatprep.subr.mxu0 0.0
        %980 = vmatpush1.xpose.msra.mxu0 0.0
        %981 = vmatprep.subr.mxu0 0.0
        %982 = vmatpush1.xpose.msra.mxu0 0.0
        %983 = vmatprep.subr.mxu0 0.0
        %984 = vmatpush1.xpose.msra.mxu0 0.0
        %985 = vmatprep.subr.mxu0 0.0
        %986 = vmatpush1.xpose.msra.mxu0 0.0
        %987 = vmatprep.subr.mxu0 0.0
        %988 = vmatpush1.xpose.msra.mxu0 0.0
        %989 = vmatprep.subr.mxu0 0.0
        %990 = vmatpush1.xpose.msra.mxu0 0.0
        %991 = vmatprep.subr.mxu0 0.0
        %992 = vmatpush1.xpose.msra.mxu0 0.0
        %993 = vmatprep.subr.mxu0 0.0
        %994 = vmatpush1.xpose.msra.mxu0 0.0
        %995 = vmatprep.mubr.f32.mxu0 0.0
        %996 = vmatmul.mubr.f32.gmra.mrb[0].mxu0 %v927
        %v997 = vpop.f32.mrb[0].mxu0
        %v998 = vadd.f32 %v592, %v997
        %v999 = vpop.f32.mrb[0].mxu0
        %1000 = vdwg.mxu0
        %v1001 = vsel %vm594, %v998, -inf
        %1002 = vmax.xlane.f32.xlu0 %v1001
        %v1003 = vpop.xlane.xlu0 %1002
        %v1004 = vsub.f32 %v998, %v1003
        %v1005 = vmul.f32 %v1004, 1.442695
        %v1006 = vpow.pop %v1005
        %v1007 = vsel %vm594, %v1006, 0.0
        %1008 = vadd.xlane.f32.xlu0 %v1007
        %v1009 = vpop.xlane.xlu0 %1008
        %1010 = vrot.lane.b32.xlu0 %v580, 80
        %v1011 = vpop.permute.xlu0 %1010
        %v1014 = vsel %vm594, %v1006, 0
        %1016 = vmatprep.subr.mxu0 0.0
        %1017 = vmatpush1.msra.mxu0 %v1011
        %1018 = vmatprep.subr.mxu0 0.0
        %1019 = vmatpush1.msra.mxu0 0.0
        %1020 = vmatprep.subr.mxu0 0.0
        %1021 = vmatpush1.msra.mxu0 0.0
        %1022 = vmatprep.subr.mxu0 0.0
        %1023 = vmatpush1.msra.mxu0 0.0
        %1024 = vmatprep.subr.mxu0 0.0
        %1025 = vmatpush1.msra.mxu0 0.0
        %1026 = vmatprep.subr.mxu0 0.0
        %1027 = vmatpush1.msra.mxu0 0.0
        %1028 = vmatprep.subr.mxu0 0.0
        %1029 = vmatpush1.msra.mxu0 0.0
        %1030 = vmatprep.subr.mxu0 0.0
        %1031 = vmatpush1.msra.mxu0 0.0
        %1032 = vmatprep.subr.mxu0 0.0
        %1033 = vmatpush1.msra.mxu0 0.0
        %1034 = vmatprep.subr.mxu0 0.0
        %1035 = vmatpush1.msra.mxu0 0.0
        %1036 = vmatprep.subr.mxu0 0.0
        %1037 = vmatpush1.msra.mxu0 0.0
        %1038 = vmatprep.subr.mxu0 0.0
        %1039 = vmatpush1.msra.mxu0 0.0
        %1040 = vmatprep.subr.mxu0 0.0
        %1041 = vmatpush1.msra.mxu0 0.0
        %1042 = vmatprep.subr.mxu0 0.0
        %1043 = vmatpush1.msra.mxu0 0.0
        %1044 = vmatprep.subr.mxu0 0.0
        %1045 = vmatpush1.msra.mxu0 0.0
        %1046 = vmatprep.subr.mxu0 0.0
        %1047 = vmatpush1.msra.mxu0 0.0
        %1048 = vmatprep.subr.mxu0 0.0
        %1049 = vmatpush1.msra.mxu0 0.0
        %1050 = vmatprep.subr.mxu0 0.0
        %1051 = vmatpush1.msra.mxu0 0.0
        %1052 = vmatprep.subr.mxu0 0.0
        %1053 = vmatpush1.msra.mxu0 0.0
        %1054 = vmatprep.subr.mxu0 0.0
        %1055 = vmatpush1.msra.mxu0 0.0
        %1056 = vmatprep.subr.mxu0 0.0
        %1057 = vmatpush1.msra.mxu0 0.0
        %1058 = vmatprep.subr.mxu0 0.0
        %1059 = vmatpush1.msra.mxu0 0.0
        %1060 = vmatprep.subr.mxu0 0.0
        %1061 = vmatpush1.msra.mxu0 0.0
        %1062 = vmatprep.subr.mxu0 0.0
        %1063 = vmatpush1.msra.mxu0 0.0
        %1064 = vmatprep.subr.mxu0 0.0
        %1065 = vmatpush1.msra.mxu0 0.0
        %1066 = vmatprep.subr.mxu0 0.0
        %1067 = vmatpush1.msra.mxu0 0.0
        %1068 = vmatprep.subr.mxu0 0.0
        %1069 = vmatpush1.msra.mxu0 0.0
        %1070 = vmatprep.subr.mxu0 0.0
        %1071 = vmatpush1.msra.mxu0 0.0
        %1072 = vmatprep.subr.mxu0 0.0
        %1073 = vmatpush1.msra.mxu0 0.0
        %1074 = vmatprep.subr.mxu0 0.0
        %1075 = vmatpush1.msra.mxu0 0.0
        %1076 = vmatprep.subr.mxu0 0.0
        %1077 = vmatpush1.msra.mxu0 0.0
        %1078 = vmatprep.subr.mxu0 0.0
        %1079 = vmatpush1.msra.mxu0 0.0
        %1080 = vmatprep.mubr.f32.mxu0 0.0
        %1081 = vmatmul.mubr.f32.gmra.mrb[0].mxu0 %v1014
        %v1082 = vpop.f32.mrb[0].mxu0
        %v1083 = vadd.f32 0.0, %v1082
        %v1084 = vpop.f32.mrb[0].mxu0
        %1085 = vdwg.mxu0
        %v1086 = vrcp.pop %v1009
        %v1087 = vmul.f32 %v1083, %v1086
        %1088 = vrot.lane.b32.xlu0 %v586, 104
        %v1089 = vpop.permute.xlu0 %1088
        %1090 = vrot.lane.b32.xlu0 %v580, 104
        %v1091 = vpop.permute.xlu0 %1090
        %v1092 = vsel %vm594, %v1089, 0
        %v1094 = vsel %vm594, %v1091, 0
        %1096 = vmatprep.subr.mxu0 0.0
        %1097 = vmatpush1.xpose.msra.mxu0 %v1094
        %1098 = vmatprep.subr.mxu0 0.0
        %1099 = vmatpush1.xpose.msra.mxu0 0.0
        %1100 = vmatprep.subr.mxu0 0.0
        %1101 = vmatpush1.xpose.msra.mxu0 0.0
        %1102 = vmatprep.subr.mxu0 0.0
        %1103 = vmatpush1.xpose.msra.mxu0 0.0
        %1104 = vmatprep.subr.mxu0 0.0
        %1105 = vmatpush1.xpose.msra.mxu0 0.0
        %1106 = vmatprep.subr.mxu0 0.0
        %1107 = vmatpush1.xpose.msra.mxu0 0.0
        %1108 = vmatprep.subr.mxu0 0.0
        %1109 = vmatpush1.xpose.msra.mxu0 0.0
        %1110 = vmatprep.subr.mxu0 0.0
        %1111 = vmatpush1.xpose.msra.mxu0 0.0
        %1112 = vmatprep.subr.mxu0 0.0
        %1113 = vmatpush1.xpose.msra.mxu0 0.0
        %1114 = vmatprep.subr.mxu0 0.0
        %1115 = vmatpush1.xpose.msra.mxu0 0.0
        %1116 = vmatprep.subr.mxu0 0.0
        %1117 = vmatpush1.xpose.msra.mxu0 0.0
        %1118 = vmatprep.subr.mxu0 0.0
        %1119 = vmatpush1.xpose.msra.mxu0 0.0
        %1120 = vmatprep.subr.mxu0 0.0
        %1121 = vmatpush1.xpose.msra.mxu0 0.0
        %1122 = vmatprep.subr.mxu0 0.0
        %1123 = vmatpush1.xpose.msra.mxu0 0.0
        %1124 = vmatprep.subr.mxu0 0.0
        %1125 = vmatpush1.xpose.msra.mxu0 0.0
        %1126 = vmatprep.subr.mxu0 0.0
        %1127 = vmatpush1.xpose.msra.mxu0 0.0
        %1128 = vmatprep.subr.mxu0 0.0
        %1129 = vmatpush1.xpose.msra.mxu0 0.0
        %1130 = vmatprep.subr.mxu0 0.0
        %1131 = vmatpush1.xpose.msra.mxu0 0.0
        %1132 = vmatprep.subr.mxu0 0.0
        %1133 = vmatpush1.xpose.msra.mxu0 0.0
        %1134 = vmatprep.subr.mxu0 0.0
        %1135 = vmatpush1.xpose.msra.mxu0 0.0
        %1136 = vmatprep.subr.mxu0 0.0
        %1137 = vmatpush1.xpose.msra.mxu0 0.0
        %1138 = vmatprep.subr.mxu0 0.0
        %1139 = vmatpush1.xpose.msra.mxu0 0.0
        %1140 = vmatprep.subr.mxu0 0.0
        %1141 = vmatpush1.xpose.msra.mxu0 0.0
        %1142 = vmatprep.subr.mxu0 0.0
        %1143 = vmatpush1.xpose.msra.mxu0 0.0
        %1144 = vmatprep.subr.mxu0 0.0
        %1145 = vmatpush1.xpose.msra.mxu0 0.0
        %1146 = vmatprep.subr.mxu0 0.0
        %1147 = vmatpush1.xpose.msra.mxu0 0.0
        %1148 = vmatprep.subr.mxu0 0.0
        %1149 = vmatpush1.xpose.msra.mxu0 0.0
        %1150 = vmatprep.subr.mxu0 0.0
        %1151 = vmatpush1.xpose.msra.mxu0 0.0
        %1152 = vmatprep.subr.mxu0 0.0
        %1153 = vmatpush1.xpose.msra.mxu0 0.0
        %1154 = vmatprep.subr.mxu0 0.0
        %1155 = vmatpush1.xpose.msra.mxu0 0.0
        %1156 = vmatprep.subr.mxu0 0.0
        %1157 = vmatpush1.xpose.msra.mxu0 0.0
        %1158 = vmatprep.subr.mxu0 0.0
        %1159 = vmatpush1.xpose.msra.mxu0 0.0
        %1160 = vmatprep.mubr.f32.mxu0 0.0
        %1161 = vmatmul.mubr.f32.gmra.mrb[0].mxu0 %v1092
        %v1162 = vpop.f32.mrb[0].mxu0
        %v1163 = vadd.f32 %v592, %v1162
        %v1164 = vpop.f32.mrb[0].mxu0
        %1165 = vdwg.mxu0
        %v1166 = vsel %vm594, %v1163, -inf
        %1167 = vmax.xlane.f32.xlu0 %v1166
        %v1168 = vpop.xlane.xlu0 %1167
        %v1169 = vsub.f32 %v1163, %v1168
        %v1170 = vmul.f32 %v1169, 1.442695
        %v1171 = vpow.pop %v1170
        %v1172 = vsel %vm594, %v1171, 0.0
        %1173 = vadd.xlane.f32.xlu0 %v1172
        %v1174 = vpop.xlane.xlu0 %1173
        %1175 = vrot.lane.b32.xlu0 %v580, 72
        %v1176 = vpop.permute.xlu0 %1175
        %v1179 = vsel %vm594, %v1171, 0
        %1181 = vmatprep.subr.mxu0 0.0
        %1182 = vmatpush1.msra.mxu0 %v1176
        %1183 = vmatprep.subr.mxu0 0.0
        %1184 = vmatpush1.msra.mxu0 0.0
        %1185 = vmatprep.subr.mxu0 0.0
        %1186 = vmatpush1.msra.mxu0 0.0
        %1187 = vmatprep.subr.mxu0 0.0
        %1188 = vmatpush1.msra.mxu0 0.0
        %1189 = vmatprep.subr.mxu0 0.0
        %1190 = vmatpush1.msra.mxu0 0.0
        %1191 = vmatprep.subr.mxu0 0.0
        %1192 = vmatpush1.msra.mxu0 0.0
        %1193 = vmatprep.subr.mxu0 0.0
        %1194 = vmatpush1.msra.mxu0 0.0
        %1195 = vmatprep.subr.mxu0 0.0
        %1196 = vmatpush1.msra.mxu0 0.0
        %1197 = vmatprep.subr.mxu0 0.0
        %1198 = vmatpush1.msra.mxu0 0.0
        %1199 = vmatprep.subr.mxu0 0.0
        %1200 = vmatpush1.msra.mxu0 0.0
        %1201 = vmatprep.subr.mxu0 0.0
        %1202 = vmatpush1.msra.mxu0 0.0
        %1203 = vmatprep.subr.mxu0 0.0
        %1204 = vmatpush1.msra.mxu0 0.0
        %1205 = vmatprep.subr.mxu0 0.0
        %1206 = vmatpush1.msra.mxu0 0.0
        %1207 = vmatprep.subr.mxu0 0.0
        %1208 = vmatpush1.msra.mxu0 0.0
        %1209 = vmatprep.subr.mxu0 0.0
        %1210 = vmatpush1.msra.mxu0 0.0
        %1211 = vmatprep.subr.mxu0 0.0
        %1212 = vmatpush1.msra.mxu0 0.0
        %1213 = vmatprep.subr.mxu0 0.0
        %1214 = vmatpush1.msra.mxu0 0.0
        %1215 = vmatprep.subr.mxu0 0.0
        %1216 = vmatpush1.msra.mxu0 0.0
        %1217 = vmatprep.subr.mxu0 0.0
        %1218 = vmatpush1.msra.mxu0 0.0
        %1219 = vmatprep.subr.mxu0 0.0
        %1220 = vmatpush1.msra.mxu0 0.0
        %1221 = vmatprep.subr.mxu0 0.0
        %1222 = vmatpush1.msra.mxu0 0.0
        %1223 = vmatprep.subr.mxu0 0.0
        %1224 = vmatpush1.msra.mxu0 0.0
        %1225 = vmatprep.subr.mxu0 0.0
        %1226 = vmatpush1.msra.mxu0 0.0
        %1227 = vmatprep.subr.mxu0 0.0
        %1228 = vmatpush1.msra.mxu0 0.0
        %1229 = vmatprep.subr.mxu0 0.0
        %1230 = vmatpush1.msra.mxu0 0.0
        %1231 = vmatprep.subr.mxu0 0.0
        %1232 = vmatpush1.msra.mxu0 0.0
        %1233 = vmatprep.subr.mxu0 0.0
        %1234 = vmatpush1.msra.mxu0 0.0
        %1235 = vmatprep.subr.mxu0 0.0
        %1236 = vmatpush1.msra.mxu0 0.0
        %1237 = vmatprep.subr.mxu0 0.0
        %1238 = vmatpush1.msra.mxu0 0.0
        %1239 = vmatprep.subr.mxu0 0.0
        %1240 = vmatpush1.msra.mxu0 0.0
        %1241 = vmatprep.subr.mxu0 0.0
        %1242 = vmatpush1.msra.mxu0 0.0
        %1243 = vmatprep.subr.mxu0 0.0
        %1244 = vmatpush1.msra.mxu0 0.0
        %1245 = vmatprep.mubr.f32.mxu0 0.0
        %1246 = vmatmul.mubr.f32.gmra.mrb[0].mxu0 %v1179
        %v1247 = vpop.f32.mrb[0].mxu0
        %v1248 = vadd.f32 0.0, %v1247
        %v1249 = vpop.f32.mrb[0].mxu0
        %1250 = vdwg.mxu0
        %v1251 = vrcp.pop %v1174
        %v1252 = vmul.f32 %v1248, %v1251
        %1254 = vrot.lane.b32.xlu0 %v922, 8
        %v1255 = vpop.permute.xlu0 %1254
        %1258 = vrot.lane.b32.xlu0 %v1087, 16
        %v1259 = vpop.permute.xlu0 %1258
        %1262 = vrot.lane.b32.xlu0 %v1252, 24
        %v1263 = vpop.permute.xlu0 %1262
        %v1265 = vsel %vm594, %v757, %v1255
        %vm1266 = vcmask 130048
        %v1267 = vsel %vm1266, %v1265, %v1259
        %vm1268 = vcmask 195584
        %v1269 = vsel %vm1268, %v1267, %v1263
        %1270 = vst.msk [vmem:[%s401] sm:$0xff] %vm425, %v1269
        %1272 = vrot.lane.b32.xlu0 %v587, 64
        %v1273 = vpop.permute.xlu0 %1272
        %1275 = vrot.lane.b32.xlu0 %v496, 96
        %v1276 = vpop.permute.xlu0 %1275
        %v1277 = vsel %vm594, %v1273, 0
        %v1279 = vsel %vm594, %v1276, 0
        %1281 = vmatprep.subr.mxu0 0.0
        %1282 = vmatpush1.xpose.msra.mxu0 %v1279
        %1283 = vmatprep.subr.mxu0 0.0
        %1284 = vmatpush1.xpose.msra.mxu0 0.0
        %1285 = vmatprep.subr.mxu0 0.0
        %1286 = vmatpush1.xpose.msra.mxu0 0.0
        %1287 = vmatprep.subr.mxu0 0.0
        %1288 = vmatpush1.xpose.msra.mxu0 0.0
        %1289 = vmatprep.subr.mxu0 0.0
        %1290 = vmatpush1.xpose.msra.mxu0 0.0
        %1291 = vmatprep.subr.mxu0 0.0
        %1292 = vmatpush1.xpose.msra.mxu0 0.0
        %1293 = vmatprep.subr.mxu0 0.0
        %1294 = vmatpush1.xpose.msra.mxu0 0.0
        %1295 = vmatprep.subr.mxu0 0.0
        %1296 = vmatpush1.xpose.msra.mxu0 0.0
        %1297 = vmatprep.subr.mxu0 0.0
        %1298 = vmatpush1.xpose.msra.mxu0 0.0
        %1299 = vmatprep.subr.mxu0 0.0
        %1300 = vmatpush1.xpose.msra.mxu0 0.0
        %1301 = vmatprep.subr.mxu0 0.0
        %1302 = vmatpush1.xpose.msra.mxu0 0.0
        %1303 = vmatprep.subr.mxu0 0.0
        %1304 = vmatpush1.xpose.msra.mxu0 0.0
        %1305 = vmatprep.subr.mxu0 0.0
        %1306 = vmatpush1.xpose.msra.mxu0 0.0
        %1307 = vmatprep.subr.mxu0 0.0
        %1308 = vmatpush1.xpose.msra.mxu0 0.0
        %1309 = vmatprep.subr.mxu0 0.0
        %1310 = vmatpush1.xpose.msra.mxu0 0.0
        %1311 = vmatprep.subr.mxu0 0.0
        %1312 = vmatpush1.xpose.msra.mxu0 0.0
        %1313 = vmatprep.subr.mxu0 0.0
        %1314 = vmatpush1.xpose.msra.mxu0 0.0
        %1315 = vmatprep.subr.mxu0 0.0
        %1316 = vmatpush1.xpose.msra.mxu0 0.0
        %1317 = vmatprep.subr.mxu0 0.0
        %1318 = vmatpush1.xpose.msra.mxu0 0.0
        %1319 = vmatprep.subr.mxu0 0.0
        %1320 = vmatpush1.xpose.msra.mxu0 0.0
        %1321 = vmatprep.subr.mxu0 0.0
        %1322 = vmatpush1.xpose.msra.mxu0 0.0
        %1323 = vmatprep.subr.mxu0 0.0
        %1324 = vmatpush1.xpose.msra.mxu0 0.0
        %1325 = vmatprep.subr.mxu0 0.0
        %1326 = vmatpush1.xpose.msra.mxu0 0.0
        %1327 = vmatprep.subr.mxu0 0.0
        %1328 = vmatpush1.xpose.msra.mxu0 0.0
        %1329 = vmatprep.subr.mxu0 0.0
        %1330 = vmatpush1.xpose.msra.mxu0 0.0
        %1331 = vmatprep.subr.mxu0 0.0
        %1332 = vmatpush1.xpose.msra.mxu0 0.0
        %1333 = vmatprep.subr.mxu0 0.0
        %1334 = vmatpush1.xpose.msra.mxu0 0.0
        %1335 = vmatprep.subr.mxu0 0.0
        %1336 = vmatpush1.xpose.msra.mxu0 0.0
        %1337 = vmatprep.subr.mxu0 0.0
        %1338 = vmatpush1.xpose.msra.mxu0 0.0
        %1339 = vmatprep.subr.mxu0 0.0
        %1340 = vmatpush1.xpose.msra.mxu0 0.0
        %1341 = vmatprep.subr.mxu0 0.0
        %1342 = vmatpush1.xpose.msra.mxu0 0.0
        %1343 = vmatprep.subr.mxu0 0.0
        %1344 = vmatpush1.xpose.msra.mxu0 0.0
        %1345 = vmatprep.mubr.f32.mxu0 0.0
        %1346 = vmatmul.mubr.f32.gmra.mrb[0].mxu0 %v1277
        %v1347 = vpop.f32.mrb[0].mxu0
        %v1348 = vadd.f32 %v592, %v1347
        %v1349 = vpop.f32.mrb[0].mxu0
        %1350 = vdwg.mxu0
        %v1351 = vsel %vm594, %v1348, -inf
        %1352 = vmax.xlane.f32.xlu0 %v1351
        %v1353 = vpop.xlane.xlu0 %1352
        %v1354 = vsub.f32 %v1348, %v1353
        %v1355 = vmul.f32 %v1354, 1.442695
        %v1356 = vpow.pop %v1355
        %v1357 = vsel %vm594, %v1356, 0.0
        %1358 = vadd.xlane.f32.xlu0 %v1357
        %v1359 = vpop.xlane.xlu0 %1358
        %1360 = vrot.lane.b32.xlu0 %v496, 64
        %v1361 = vpop.permute.xlu0 %1360
        %v1364 = vsel %vm594, %v1356, 0
        %1366 = vmatprep.subr.mxu0 0.0
        %1367 = vmatpush1.msra.mxu0 %v1361
        %1368 = vmatprep.subr.mxu0 0.0
        %1369 = vmatpush1.msra.mxu0 0.0
        %1370 = vmatprep.subr.mxu0 0.0
        %1371 = vmatpush1.msra.mxu0 0.0
        %1372 = vmatprep.subr.mxu0 0.0
        %1373 = vmatpush1.msra.mxu0 0.0
        %1374 = vmatprep.subr.mxu0 0.0
        %1375 = vmatpush1.msra.mxu0 0.0
        %1376 = vmatprep.subr.mxu0 0.0
        %1377 = vmatpush1.msra.mxu0 0.0
        %1378 = vmatprep.subr.mxu0 0.0
        %1379 = vmatpush1.msra.mxu0 0.0
        %1380 = vmatprep.subr.mxu0 0.0
        %1381 = vmatpush1.msra.mxu0 0.0
        %1382 = vmatprep.subr.mxu0 0.0
        %1383 = vmatpush1.msra.mxu0 0.0
        %1384 = vmatprep.subr.mxu0 0.0
        %1385 = vmatpush1.msra.mxu0 0.0
        %1386 = vmatprep.subr.mxu0 0.0
        %1387 = vmatpush1.msra.mxu0 0.0
        %1388 = vmatprep.subr.mxu0 0.0
        %1389 = vmatpush1.msra.mxu0 0.0
        %1390 = vmatprep.subr.mxu0 0.0
        %1391 = vmatpush1.msra.mxu0 0.0
        %1392 = vmatprep.subr.mxu0 0.0
        %1393 = vmatpush1.msra.mxu0 0.0
        %1394 = vmatprep.subr.mxu0 0.0
        %1395 = vmatpush1.msra.mxu0 0.0
        %1396 = vmatprep.subr.mxu0 0.0
        %1397 = vmatpush1.msra.mxu0 0.0
        %1398 = vmatprep.subr.mxu0 0.0
        %1399 = vmatpush1.msra.mxu0 0.0
        %1400 = vmatprep.subr.mxu0 0.0
        %1401 = vmatpush1.msra.mxu0 0.0
        %1402 = vmatprep.subr.mxu0 0.0
        %1403 = vmatpush1.msra.mxu0 0.0
        %1404 = vmatprep.subr.mxu0 0.0
        %1405 = vmatpush1.msra.mxu0 0.0
        %1406 = vmatprep.subr.mxu0 0.0
        %1407 = vmatpush1.msra.mxu0 0.0
        %1408 = vmatprep.subr.mxu0 0.0
        %1409 = vmatpush1.msra.mxu0 0.0
        %1410 = vmatprep.subr.mxu0 0.0
        %1411 = vmatpush1.msra.mxu0 0.0
        %1412 = vmatprep.subr.mxu0 0.0
        %1413 = vmatpush1.msra.mxu0 0.0
        %1414 = vmatprep.subr.mxu0 0.0
        %1415 = vmatpush1.msra.mxu0 0.0
        %1416 = vmatprep.subr.mxu0 0.0
        %1417 = vmatpush1.msra.mxu0 0.0
        %1418 = vmatprep.subr.mxu0 0.0
        %1419 = vmatpush1.msra.mxu0 0.0
        %1420 = vmatprep.subr.mxu0 0.0
        %1421 = vmatpush1.msra.mxu0 0.0
        %1422 = vmatprep.subr.mxu0 0.0
        %1423 = vmatpush1.msra.mxu0 0.0
        %1424 = vmatprep.subr.mxu0 0.0
        %1425 = vmatpush1.msra.mxu0 0.0
        %1426 = vmatprep.subr.mxu0 0.0
        %1427 = vmatpush1.msra.mxu0 0.0
        %1428 = vmatprep.subr.mxu0 0.0
        %1429 = vmatpush1.msra.mxu0 0.0
        %1430 = vmatprep.mubr.f32.mxu0 0.0
        %1431 = vmatmul.mubr.f32.gmra.mrb[0].mxu0 %v1364
        %v1432 = vpop.f32.mrb[0].mxu0
        %v1433 = vadd.f32 0.0, %v1432
        %v1434 = vpop.f32.mrb[0].mxu0
        %1435 = vdwg.mxu0
        %v1436 = vrcp.pop %v1359
        %v1437 = vmul.f32 %v1433, %v1436
        %1438 = vrot.lane.b32.xlu0 %v587, 56
        %v1439 = vpop.permute.xlu0 %1438
        %1440 = vrot.lane.b32.xlu0 %v496, 88
        %v1441 = vpop.permute.xlu0 %1440
        %v1442 = vsel %vm594, %v1439, 0
        %v1444 = vsel %vm594, %v1441, 0
        %1446 = vmatprep.subr.mxu0 0.0
        %1447 = vmatpush1.xpose.msra.mxu0 %v1444
        %1448 = vmatprep.subr.mxu0 0.0
        %1449 = vmatpush1.xpose.msra.mxu0 0.0
        %1450 = vmatprep.subr.mxu0 0.0
        %1451 = vmatpush1.xpose.msra.mxu0 0.0
        %1452 = vmatprep.subr.mxu0 0.0
        %1453 = vmatpush1.xpose.msra.mxu0 0.0
        %1454 = vmatprep.subr.mxu0 0.0
        %1455 = vmatpush1.xpose.msra.mxu0 0.0
        %1456 = vmatprep.subr.mxu0 0.0
        %1457 = vmatpush1.xpose.msra.mxu0 0.0
        %1458 = vmatprep.subr.mxu0 0.0
        %1459 = vmatpush1.xpose.msra.mxu0 0.0
        %1460 = vmatprep.subr.mxu0 0.0
        %1461 = vmatpush1.xpose.msra.mxu0 0.0
        %1462 = vmatprep.subr.mxu0 0.0
        %1463 = vmatpush1.xpose.msra.mxu0 0.0
        %1464 = vmatprep.subr.mxu0 0.0
        %1465 = vmatpush1.xpose.msra.mxu0 0.0
        %1466 = vmatprep.subr.mxu0 0.0
        %1467 = vmatpush1.xpose.msra.mxu0 0.0
        %1468 = vmatprep.subr.mxu0 0.0
        %1469 = vmatpush1.xpose.msra.mxu0 0.0
        %1470 = vmatprep.subr.mxu0 0.0
        %1471 = vmatpush1.xpose.msra.mxu0 0.0
        %1472 = vmatprep.subr.mxu0 0.0
        %1473 = vmatpush1.xpose.msra.mxu0 0.0
        %1474 = vmatprep.subr.mxu0 0.0
        %1475 = vmatpush1.xpose.msra.mxu0 0.0
        %1476 = vmatprep.subr.mxu0 0.0
        %1477 = vmatpush1.xpose.msra.mxu0 0.0
        %1478 = vmatprep.subr.mxu0 0.0
        %1479 = vmatpush1.xpose.msra.mxu0 0.0
        %1480 = vmatprep.subr.mxu0 0.0
        %1481 = vmatpush1.xpose.msra.mxu0 0.0
        %1482 = vmatprep.subr.mxu0 0.0
        %1483 = vmatpush1.xpose.msra.mxu0 0.0
        %1484 = vmatprep.subr.mxu0 0.0
        %1485 = vmatpush1.xpose.msra.mxu0 0.0
        %1486 = vmatprep.subr.mxu0 0.0
        %1487 = vmatpush1.xpose.msra.mxu0 0.0
        %1488 = vmatprep.subr.mxu0 0.0
        %1489 = vmatpush1.xpose.msra.mxu0 0.0
        %1490 = vmatprep.subr.mxu0 0.0
        %1491 = vmatpush1.xpose.msra.mxu0 0.0
        %1492 = vmatprep.subr.mxu0 0.0
        %1493 = vmatpush1.xpose.msra.mxu0 0.0
        %1494 = vmatprep.subr.mxu0 0.0
        %1495 = vmatpush1.xpose.msra.mxu0 0.0
        %1496 = vmatprep.subr.mxu0 0.0
        %1497 = vmatpush1.xpose.msra.mxu0 0.0
        %1498 = vmatprep.subr.mxu0 0.0
        %1499 = vmatpush1.xpose.msra.mxu0 0.0
        %1500 = vmatprep.subr.mxu0 0.0
        %1501 = vmatpush1.xpose.msra.mxu0 0.0
        %1502 = vmatprep.subr.mxu0 0.0
        %1503 = vmatpush1.xpose.msra.mxu0 0.0
        %1504 = vmatprep.subr.mxu0 0.0
        %1505 = vmatpush1.xpose.msra.mxu0 0.0
        %1506 = vmatprep.subr.mxu0 0.0
        %1507 = vmatpush1.xpose.msra.mxu0 0.0
        %1508 = vmatprep.subr.mxu0 0.0
        %1509 = vmatpush1.xpose.msra.mxu0 0.0
        %1510 = vmatprep.mubr.f32.mxu0 0.0
        %1511 = vmatmul.mubr.f32.gmra.mrb[0].mxu0 %v1442
        %v1512 = vpop.f32.mrb[0].mxu0
        %v1513 = vadd.f32 %v592, %v1512
        %v1514 = vpop.f32.mrb[0].mxu0
        %1515 = vdwg.mxu0
        %v1516 = vsel %vm594, %v1513, -inf
        %1517 = vmax.xlane.f32.xlu0 %v1516
        %v1518 = vpop.xlane.xlu0 %1517
        %v1519 = vsub.f32 %v1513, %v1518
        %v1520 = vmul.f32 %v1519, 1.442695
        %v1521 = vpow.pop %v1520
        %v1522 = vsel %vm594, %v1521, 0.0
        %1523 = vadd.xlane.f32.xlu0 %v1522
        %v1524 = vpop.xlane.xlu0 %1523
        %1525 = vrot.lane.b32.xlu0 %v496, 56
        %v1526 = vpop.permute.xlu0 %1525
        %v1529 = vsel %vm594, %v1521, 0
        %1531 = vmatprep.subr.mxu0 0.0
        %1532 = vmatpush1.msra.mxu0 %v1526
        %1533 = vmatprep.subr.mxu0 0.0
        %1534 = vmatpush1.msra.mxu0 0.0
        %1535 = vmatprep.subr.mxu0 0.0
        %1536 = vmatpush1.msra.mxu0 0.0
        %1537 = vmatprep.subr.mxu0 0.0
        %1538 = vmatpush1.msra.mxu0 0.0
        %1539 = vmatprep.subr.mxu0 0.0
        %1540 = vmatpush1.msra.mxu0 0.0
        %1541 = vmatprep.subr.mxu0 0.0
        %1542 = vmatpush1.msra.mxu0 0.0
        %1543 = vmatprep.subr.mxu0 0.0
        %1544 = vmatpush1.msra.mxu0 0.0
        %1545 = vmatprep.subr.mxu0 0.0
        %1546 = vmatpush1.msra.mxu0 0.0
        %1547 = vmatprep.subr.mxu0 0.0
        %1548 = vmatpush1.msra.mxu0 0.0
        %1549 = vmatprep.subr.mxu0 0.0
        %1550 = vmatpush1.msra.mxu0 0.0
        %1551 = vmatprep.subr.mxu0 0.0
        %1552 = vmatpush1.msra.mxu0 0.0
        %1553 = vmatprep.subr.mxu0 0.0
        %1554 = vmatpush1.msra.mxu0 0.0
        %1555 = vmatprep.subr.mxu0 0.0
        %1556 = vmatpush1.msra.mxu0 0.0
        %1557 = vmatprep.subr.mxu0 0.0
        %1558 = vmatpush1.msra.mxu0 0.0
        %1559 = vmatprep.subr.mxu0 0.0
        %1560 = vmatpush1.msra.mxu0 0.0
        %1561 = vmatprep.subr.mxu0 0.0
        %1562 = vmatpush1.msra.mxu0 0.0
        %1563 = vmatprep.subr.mxu0 0.0
        %1564 = vmatpush1.msra.mxu0 0.0
        %1565 = vmatprep.subr.mxu0 0.0
        %1566 = vmatpush1.msra.mxu0 0.0
        %1567 = vmatprep.subr.mxu0 0.0
        %1568 = vmatpush1.msra.mxu0 0.0
        %1569 = vmatprep.subr.mxu0 0.0
        %1570 = vmatpush1.msra.mxu0 0.0
        %1571 = vmatprep.subr.mxu0 0.0
        %1572 = vmatpush1.msra.mxu0 0.0
        %1573 = vmatprep.subr.mxu0 0.0
        %1574 = vmatpush1.msra.mxu0 0.0
        %1575 = vmatprep.subr.mxu0 0.0
        %1576 = vmatpush1.msra.mxu0 0.0
        %1577 = vmatprep.subr.mxu0 0.0
        %1578 = vmatpush1.msra.mxu0 0.0
        %1579 = vmatprep.subr.mxu0 0.0
        %1580 = vmatpush1.msra.mxu0 0.0
        %1581 = vmatprep.subr.mxu0 0.0
        %1582 = vmatpush1.msra.mxu0 0.0
        %1583 = vmatprep.subr.mxu0 0.0
        %1584 = vmatpush1.msra.mxu0 0.0
        %1585 = vmatprep.subr.mxu0 0.0
        %1586 = vmatpush1.msra.mxu0 0.0
        %1587 = vmatprep.subr.mxu0 0.0
        %1588 = vmatpush1.msra.mxu0 0.0
        %1589 = vmatprep.subr.mxu0 0.0
        %1590 = vmatpush1.msra.mxu0 0.0
        %1591 = vmatprep.subr.mxu0 0.0
        %1592 = vmatpush1.msra.mxu0 0.0
        %1593 = vmatprep.subr.mxu0 0.0
        %1594 = vmatpush1.msra.mxu0 0.0
        %1595 = vmatprep.mubr.f32.mxu0 0.0
        %1596 = vmatmul.mubr.f32.gmra.mrb[0].mxu0 %v1529
        %v1597 = vpop.f32.mrb[0].mxu0
        %v1598 = vadd.f32 0.0, %v1597
        %v1599 = vpop.f32.mrb[0].mxu0
        %1600 = vdwg.mxu0
        %v1601 = vrcp.pop %v1524
        %v1602 = vmul.f32 %v1598, %v1601
        %1603 = vrot.lane.b32.xlu0 %v587, 48
        %v1604 = vpop.permute.xlu0 %1603
        %1605 = vrot.lane.b32.xlu0 %v496, 80
        %v1606 = vpop.permute.xlu0 %1605
        %v1607 = vsel %vm594, %v1604, 0
        %v1609 = vsel %vm594, %v1606, 0
        %1611 = vmatprep.subr.mxu0 0.0
        %1612 = vmatpush1.xpose.msra.mxu0 %v1609
        %1613 = vmatprep.subr.mxu0 0.0
        %1614 = vmatpush1.xpose.msra.mxu0 0.0
        %1615 = vmatprep.subr.mxu0 0.0
        %1616 = vmatpush1.xpose.msra.mxu0 0.0
        %1617 = vmatprep.subr.mxu0 0.0
        %1618 = vmatpush1.xpose.msra.mxu0 0.0
        %1619 = vmatprep.subr.mxu0 0.0
        %1620 = vmatpush1.xpose.msra.mxu0 0.0
        %1621 = vmatprep.subr.mxu0 0.0
        %1622 = vmatpush1.xpose.msra.mxu0 0.0
        %1623 = vmatprep.subr.mxu0 0.0
        %1624 = vmatpush1.xpose.msra.mxu0 0.0
        %1625 = vmatprep.subr.mxu0 0.0
        %1626 = vmatpush1.xpose.msra.mxu0 0.0
        %1627 = vmatprep.subr.mxu0 0.0
        %1628 = vmatpush1.xpose.msra.mxu0 0.0
        %1629 = vmatprep.subr.mxu0 0.0
        %1630 = vmatpush1.xpose.msra.mxu0 0.0
        %1631 = vmatprep.subr.mxu0 0.0
        %1632 = vmatpush1.xpose.msra.mxu0 0.0
        %1633 = vmatprep.subr.mxu0 0.0
        %1634 = vmatpush1.xpose.msra.mxu0 0.0
        %1635 = vmatprep.subr.mxu0 0.0
        %1636 = vmatpush1.xpose.msra.mxu0 0.0
        %1637 = vmatprep.subr.mxu0 0.0
        %1638 = vmatpush1.xpose.msra.mxu0 0.0
        %1639 = vmatprep.subr.mxu0 0.0
        %1640 = vmatpush1.xpose.msra.mxu0 0.0
        %1641 = vmatprep.subr.mxu0 0.0
        %1642 = vmatpush1.xpose.msra.mxu0 0.0
        %1643 = vmatprep.subr.mxu0 0.0
        %1644 = vmatpush1.xpose.msra.mxu0 0.0
        %1645 = vmatprep.subr.mxu0 0.0
        %1646 = vmatpush1.xpose.msra.mxu0 0.0
        %1647 = vmatprep.subr.mxu0 0.0
        %1648 = vmatpush1.xpose.msra.mxu0 0.0
        %1649 = vmatprep.subr.mxu0 0.0
        %1650 = vmatpush1.xpose.msra.mxu0 0.0
        %1651 = vmatprep.subr.mxu0 0.0
        %1652 = vmatpush1.xpose.msra.mxu0 0.0
        %1653 = vmatprep.subr.mxu0 0.0
        %1654 = vmatpush1.xpose.msra.mxu0 0.0
        %1655 = vmatprep.subr.mxu0 0.0
        %1656 = vmatpush1.xpose.msra.mxu0 0.0
        %1657 = vmatprep.subr.mxu0 0.0
        %1658 = vmatpush1.xpose.msra.mxu0 0.0
        %1659 = vmatprep.subr.mxu0 0.0
        %1660 = vmatpush1.xpose.msra.mxu0 0.0
        %1661 = vmatprep.subr.mxu0 0.0
        %1662 = vmatpush1.xpose.msra.mxu0 0.0
        %1663 = vmatprep.subr.mxu0 0.0
        %1664 = vmatpush1.xpose.msra.mxu0 0.0
        %1665 = vmatprep.subr.mxu0 0.0
        %1666 = vmatpush1.xpose.msra.mxu0 0.0
        %1667 = vmatprep.subr.mxu0 0.0
        %1668 = vmatpush1.xpose.msra.mxu0 0.0
        %1669 = vmatprep.subr.mxu0 0.0
        %1670 = vmatpush1.xpose.msra.mxu0 0.0
        %1671 = vmatprep.subr.mxu0 0.0
        %1672 = vmatpush1.xpose.msra.mxu0 0.0
        %1673 = vmatprep.subr.mxu0 0.0
        %1674 = vmatpush1.xpose.msra.mxu0 0.0
        %1675 = vmatprep.mubr.f32.mxu0 0.0
        %1676 = vmatmul.mubr.f32.gmra.mrb[0].mxu0 %v1607
        %v1677 = vpop.f32.mrb[0].mxu0
        %v1678 = vadd.f32 %v592, %v1677
        %v1679 = vpop.f32.mrb[0].mxu0
        %1680 = vdwg.mxu0
        %v1681 = vsel %vm594, %v1678, -inf
        %1682 = vmax.xlane.f32.xlu0 %v1681
        %v1683 = vpop.xlane.xlu0 %1682
        %v1684 = vsub.f32 %v1678, %v1683
        %v1685 = vmul.f32 %v1684, 1.442695
        %v1686 = vpow.pop %v1685
        %v1687 = vsel %vm594, %v1686, 0.0
        %1688 = vadd.xlane.f32.xlu0 %v1687
        %v1689 = vpop.xlane.xlu0 %1688
        %1690 = vrot.lane.b32.xlu0 %v496, 48
        %v1691 = vpop.permute.xlu0 %1690
        %v1694 = vsel %vm594, %v1686, 0
        %1696 = vmatprep.subr.mxu0 0.0
        %1697 = vmatpush1.msra.mxu0 %v1691
        %1698 = vmatprep.subr.mxu0 0.0
        %1699 = vmatpush1.msra.mxu0 0.0
        %1700 = vmatprep.subr.mxu0 0.0
        %1701 = vmatpush1.msra.mxu0 0.0
        %1702 = vmatprep.subr.mxu0 0.0
        %1703 = vmatpush1.msra.mxu0 0.0
        %1704 = vmatprep.subr.mxu0 0.0
        %1705 = vmatpush1.msra.mxu0 0.0
        %1706 = vmatprep.subr.mxu0 0.0
        %1707 = vmatpush1.msra.mxu0 0.0
        %1708 = vmatprep.subr.mxu0 0.0
        %1709 = vmatpush1.msra.mxu0 0.0
        %1710 = vmatprep.subr.mxu0 0.0
        %1711 = vmatpush1.msra.mxu0 0.0
        %1712 = vmatprep.subr.mxu0 0.0
        %1713 = vmatpush1.msra.mxu0 0.0
        %1714 = vmatprep.subr.mxu0 0.0
        %1715 = vmatpush1.msra.mxu0 0.0
        %1716 = vmatprep.subr.mxu0 0.0
        %1717 = vmatpush1.msra.mxu0 0.0
        %1718 = vmatprep.subr.mxu0 0.0
        %1719 = vmatpush1.msra.mxu0 0.0
        %1720 = vmatprep.subr.mxu0 0.0
        %1721 = vmatpush1.msra.mxu0 0.0
        %1722 = vmatprep.subr.mxu0 0.0
        %1723 = vmatpush1.msra.mxu0 0.0
        %1724 = vmatprep.subr.mxu0 0.0
        %1725 = vmatpush1.msra.mxu0 0.0
        %1726 = vmatprep.subr.mxu0 0.0
        %1727 = vmatpush1.msra.mxu0 0.0
        %1728 = vmatprep.subr.mxu0 0.0
        %1729 = vmatpush1.msra.mxu0 0.0
        %1730 = vmatprep.subr.mxu0 0.0
        %1731 = vmatpush1.msra.mxu0 0.0
        %1732 = vmatprep.subr.mxu0 0.0
        %1733 = vmatpush1.msra.mxu0 0.0
        %1734 = vmatprep.subr.mxu0 0.0
        %1735 = vmatpush1.msra.mxu0 0.0
        %1736 = vmatprep.subr.mxu0 0.0
        %1737 = vmatpush1.msra.mxu0 0.0
        %1738 = vmatprep.subr.mxu0 0.0
        %1739 = vmatpush1.msra.mxu0 0.0
        %1740 = vmatprep.subr.mxu0 0.0
        %1741 = vmatpush1.msra.mxu0 0.0
        %1742 = vmatprep.subr.mxu0 0.0
        %1743 = vmatpush1.msra.mxu0 0.0
        %1744 = vmatprep.subr.mxu0 0.0
        %1745 = vmatpush1.msra.mxu0 0.0
        %1746 = vmatprep.subr.mxu0 0.0
        %1747 = vmatpush1.msra.mxu0 0.0
        %1748 = vmatprep.subr.mxu0 0.0
        %1749 = vmatpush1.msra.mxu0 0.0
        %1750 = vmatprep.subr.mxu0 0.0
        %1751 = vmatpush1.msra.mxu0 0.0
        %1752 = vmatprep.subr.mxu0 0.0
        %1753 = vmatpush1.msra.mxu0 0.0
        %1754 = vmatprep.subr.mxu0 0.0
        %1755 = vmatpush1.msra.mxu0 0.0
        %1756 = vmatprep.subr.mxu0 0.0
        %1757 = vmatpush1.msra.mxu0 0.0
        %1758 = vmatprep.subr.mxu0 0.0
        %1759 = vmatpush1.msra.mxu0 0.0
        %1760 = vmatprep.mubr.f32.mxu0 0.0
        %1761 = vmatmul.mubr.f32.gmra.mrb[0].mxu0 %v1694
        %v1762 = vpop.f32.mrb[0].mxu0
        %v1763 = vadd.f32 0.0, %v1762
        %v1764 = vpop.f32.mrb[0].mxu0
        %1765 = vdwg.mxu0
        %v1766 = vrcp.pop %v1689
        %v1767 = vmul.f32 %v1763, %v1766
        %1768 = vrot.lane.b32.xlu0 %v587, 40
        %v1769 = vpop.permute.xlu0 %1768
        %1770 = vrot.lane.b32.xlu0 %v496, 72
        %v1771 = vpop.permute.xlu0 %1770
        %v1772 = vsel %vm594, %v1769, 0
        %v1774 = vsel %vm594, %v1771, 0
        %1776 = vmatprep.subr.mxu0 0.0
        %1777 = vmatpush1.xpose.msra.mxu0 %v1774
        %1778 = vmatprep.subr.mxu0 0.0
        %1779 = vmatpush1.xpose.msra.mxu0 0.0
        %1780 = vmatprep.subr.mxu0 0.0
        %1781 = vmatpush1.xpose.msra.mxu0 0.0
        %1782 = vmatprep.subr.mxu0 0.0
        %1783 = vmatpush1.xpose.msra.mxu0 0.0
        %1784 = vmatprep.subr.mxu0 0.0
        %1785 = vmatpush1.xpose.msra.mxu0 0.0
        %1786 = vmatprep.subr.mxu0 0.0
        %1787 = vmatpush1.xpose.msra.mxu0 0.0
        %1788 = vmatprep.subr.mxu0 0.0
        %1789 = vmatpush1.xpose.msra.mxu0 0.0
        %1790 = vmatprep.subr.mxu0 0.0
        %1791 = vmatpush1.xpose.msra.mxu0 0.0
        %1792 = vmatprep.subr.mxu0 0.0
        %1793 = vmatpush1.xpose.msra.mxu0 0.0
        %1794 = vmatprep.subr.mxu0 0.0
        %1795 = vmatpush1.xpose.msra.mxu0 0.0
        %1796 = vmatprep.subr.mxu0 0.0
        %1797 = vmatpush1.xpose.msra.mxu0 0.0
        %1798 = vmatprep.subr.mxu0 0.0
        %1799 = vmatpush1.xpose.msra.mxu0 0.0
        %1800 = vmatprep.subr.mxu0 0.0
        %1801 = vmatpush1.xpose.msra.mxu0 0.0
        %1802 = vmatprep.subr.mxu0 0.0
        %1803 = vmatpush1.xpose.msra.mxu0 0.0
        %1804 = vmatprep.subr.mxu0 0.0
        %1805 = vmatpush1.xpose.msra.mxu0 0.0
        %1806 = vmatprep.subr.mxu0 0.0
        %1807 = vmatpush1.xpose.msra.mxu0 0.0
        %1808 = vmatprep.subr.mxu0 0.0
        %1809 = vmatpush1.xpose.msra.mxu0 0.0
        %1810 = vmatprep.subr.mxu0 0.0
        %1811 = vmatpush1.xpose.msra.mxu0 0.0
        %1812 = vmatprep.subr.mxu0 0.0
        %1813 = vmatpush1.xpose.msra.mxu0 0.0
        %1814 = vmatprep.subr.mxu0 0.0
        %1815 = vmatpush1.xpose.msra.mxu0 0.0
        %1816 = vmatprep.subr.mxu0 0.0
        %1817 = vmatpush1.xpose.msra.mxu0 0.0
        %1818 = vmatprep.subr.mxu0 0.0
        %1819 = vmatpush1.xpose.msra.mxu0 0.0
        %1820 = vmatprep.subr.mxu0 0.0
        %1821 = vmatpush1.xpose.msra.mxu0 0.0
        %1822 = vmatprep.subr.mxu0 0.0
        %1823 = vmatpush1.xpose.msra.mxu0 0.0
        %1824 = vmatprep.subr.mxu0 0.0
        %1825 = vmatpush1.xpose.msra.mxu0 0.0
        %1826 = vmatprep.subr.mxu0 0.0
        %1827 = vmatpush1.xpose.msra.mxu0 0.0
        %1828 = vmatprep.subr.mxu0 0.0
        %1829 = vmatpush1.xpose.msra.mxu0 0.0
        %1830 = vmatprep.subr.mxu0 0.0
        %1831 = vmatpush1.xpose.msra.mxu0 0.0
        %1832 = vmatprep.subr.mxu0 0.0
        %1833 = vmatpush1.xpose.msra.mxu0 0.0
        %1834 = vmatprep.subr.mxu0 0.0
        %1835 = vmatpush1.xpose.msra.mxu0 0.0
        %1836 = vmatprep.subr.mxu0 0.0
        %1837 = vmatpush1.xpose.msra.mxu0 0.0
        %1838 = vmatprep.subr.mxu0 0.0
        %1839 = vmatpush1.xpose.msra.mxu0 0.0
        %1840 = vmatprep.mubr.f32.mxu0 0.0
        %1841 = vmatmul.mubr.f32.gmra.mrb[0].mxu0 %v1772
        %v1842 = vpop.f32.mrb[0].mxu0
        %v1843 = vadd.f32 %v592, %v1842
        %v1844 = vpop.f32.mrb[0].mxu0
        %1845 = vdwg.mxu0
        %v1846 = vsel %vm594, %v1843, -inf
        %1847 = vmax.xlane.f32.xlu0 %v1846
        %v1848 = vpop.xlane.xlu0 %1847
        %v1849 = vsub.f32 %v1843, %v1848
        %v1850 = vmul.f32 %v1849, 1.442695
        %v1851 = vpow.pop %v1850
        %v1852 = vsel %vm594, %v1851, 0.0
        %1853 = vadd.xlane.f32.xlu0 %v1852
        %v1854 = vpop.xlane.xlu0 %1853
        %1855 = vrot.lane.b32.xlu0 %v496, 40
        %v1856 = vpop.permute.xlu0 %1855
        %v1859 = vsel %vm594, %v1851, 0
        %1861 = vmatprep.subr.mxu0 0.0
        %1862 = vmatpush1.msra.mxu0 %v1856
        %1863 = vmatprep.subr.mxu0 0.0
        %1864 = vmatpush1.msra.mxu0 0.0
        %1865 = vmatprep.subr.mxu0 0.0
        %1866 = vmatpush1.msra.mxu0 0.0
        %1867 = vmatprep.subr.mxu0 0.0
        %1868 = vmatpush1.msra.mxu0 0.0
        %1869 = vmatprep.subr.mxu0 0.0
        %1870 = vmatpush1.msra.mxu0 0.0
        %1871 = vmatprep.subr.mxu0 0.0
        %1872 = vmatpush1.msra.mxu0 0.0
        %1873 = vmatprep.subr.mxu0 0.0
        %1874 = vmatpush1.msra.mxu0 0.0
        %1875 = vmatprep.subr.mxu0 0.0
        %1876 = vmatpush1.msra.mxu0 0.0
        %1877 = vmatprep.subr.mxu0 0.0
        %1878 = vmatpush1.msra.mxu0 0.0
        %1879 = vmatprep.subr.mxu0 0.0
        %1880 = vmatpush1.msra.mxu0 0.0
        %1881 = vmatprep.subr.mxu0 0.0
        %1882 = vmatpush1.msra.mxu0 0.0
        %1883 = vmatprep.subr.mxu0 0.0
        %1884 = vmatpush1.msra.mxu0 0.0
        %1885 = vmatprep.subr.mxu0 0.0
        %1886 = vmatpush1.msra.mxu0 0.0
        %1887 = vmatprep.subr.mxu0 0.0
        %1888 = vmatpush1.msra.mxu0 0.0
        %1889 = vmatprep.subr.mxu0 0.0
        %1890 = vmatpush1.msra.mxu0 0.0
        %1891 = vmatprep.subr.mxu0 0.0
        %1892 = vmatpush1.msra.mxu0 0.0
        %1893 = vmatprep.subr.mxu0 0.0
        %1894 = vmatpush1.msra.mxu0 0.0
        %1895 = vmatprep.subr.mxu0 0.0
        %1896 = vmatpush1.msra.mxu0 0.0
        %1897 = vmatprep.subr.mxu0 0.0
        %1898 = vmatpush1.msra.mxu0 0.0
        %1899 = vmatprep.subr.mxu0 0.0
        %1900 = vmatpush1.msra.mxu0 0.0
        %1901 = vmatprep.subr.mxu0 0.0
        %1902 = vmatpush1.msra.mxu0 0.0
        %1903 = vmatprep.subr.mxu0 0.0
        %1904 = vmatpush1.msra.mxu0 0.0
        %1905 = vmatprep.subr.mxu0 0.0
        %1906 = vmatpush1.msra.mxu0 0.0
        %1907 = vmatprep.subr.mxu0 0.0
        %1908 = vmatpush1.msra.mxu0 0.0
        %1909 = vmatprep.subr.mxu0 0.0
        %1910 = vmatpush1.msra.mxu0 0.0
        %1911 = vmatprep.subr.mxu0 0.0
        %1912 = vmatpush1.msra.mxu0 0.0
        %1913 = vmatprep.subr.mxu0 0.0
        %1914 = vmatpush1.msra.mxu0 0.0
        %1915 = vmatprep.subr.mxu0 0.0
        %1916 = vmatpush1.msra.mxu0 0.0
        %1917 = vmatprep.subr.mxu0 0.0
        %1918 = vmatpush1.msra.mxu0 0.0
        %1919 = vmatprep.subr.mxu0 0.0
        %1920 = vmatpush1.msra.mxu0 0.0
        %1921 = vmatprep.subr.mxu0 0.0
        %1922 = vmatpush1.msra.mxu0 0.0
        %1923 = vmatprep.subr.mxu0 0.0
        %1924 = vmatpush1.msra.mxu0 0.0
        %1925 = vmatprep.mubr.f32.mxu0 0.0
        %1926 = vmatmul.mubr.f32.gmra.mrb[0].mxu0 %v1859
        %v1927 = vpop.f32.mrb[0].mxu0
        %v1928 = vadd.f32 0.0, %v1927
        %v1929 = vpop.f32.mrb[0].mxu0
        %1930 = vdwg.mxu0
        %v1931 = vrcp.pop %v1854
        %v1932 = vmul.f32 %v1928, %v1931
        %1934 = vrot.lane.b32.xlu0 %v1602, 8
        %v1935 = vpop.permute.xlu0 %1934
        %1938 = vrot.lane.b32.xlu0 %v1767, 16
        %v1939 = vpop.permute.xlu0 %1938
        %1942 = vrot.lane.b32.xlu0 %v1932, 24
        %v1943 = vpop.permute.xlu0 %1942
        %v1945 = vsel %vm594, %v1437, %v1935
        %v1946 = vsel %vm1266, %v1945, %v1939
        %v1947 = vsel %vm1268, %v1946, %v1943
        %1948 = vst.msk [vmem:[%s408] sm:$0xff] %vm425, %v1947
        %s1949 = sand.u32 %s203, 1
        %s1950 = scalar_lea.sflag [#allocation4], %s1949
        %s1951 = sand.u32 %s203, 1
        %s1952 = smul.addr %s1951, 8
        %s1953 = scalar_lea.vmem [#allocation10], %s1952
        %s1954 = sand.u32 %s229, 1
        %s1955 = scalar_lea.sflag [#allocation12], %s1954
        %s1956 = sand.u32 %s229, 1
        %s1957 = smul.addr %s1956, 8
        %s1958 = scalar_lea.vmem [#allocation11], %s1957
        // Predicated region
        $region65: #{tpu_custom_call.1} parent=47 // pred_check
          %p1959 = pneg %p213
        $region66: #{tpu_custom_call.1} parent=47 // pred_check_branch
          %1961 = sbr.rel (%p1959) target = $region68
        $region67: #{tpu_custom_call.1} parent=47 // pred_region
          %s1963 = ssub.s32 128, 128
          %1964 = vsyncadd %s1950, %s1963
          %s1965 = smul.addr %s33, 128
          %s1966 = scalar_lea.hbm %s7, %s1965
          %s1968 = sshll.u32 %s1953, 4
          %s1969 = int_to_ptr.vmem [resolvable:$true] %s1968
          %1971 = dma.vmem_to_hbm [thread:$0]  %s1969, 128, %s1966, %s1950
        $region68: #{tpu_custom_call.1} parent=47 // pred_fallthru
          _
        // Predicated region
        $region69: #{tpu_custom_call.1} parent=47 // pred_check
          %p1972 = pneg %p239
        $region70: #{tpu_custom_call.1} parent=47 // pred_check_branch
          %1974 = sbr.rel (%p1972) target = $region72
        $region71: #{tpu_custom_call.1} parent=47 // pred_region
          %s1976 = ssub.s32 128, 128
          %1977 = vsyncadd %s1955, %s1976
          %s1978 = smul.addr %s33, 128
          %s1979 = scalar_lea.hbm %s8, %s1978
          %s1981 = sshll.u32 %s1958, 4
          %s1982 = int_to_ptr.vmem [resolvable:$true] %s1981
          %1984 = dma.vmem_to_hbm [thread:$0]  %s1982, 128, %s1979, %s1955
        $region72: #{tpu_custom_call.1} parent=47 // pred_fallthru
          _
      $region48: #{tpu_custom_call.1} parent=5 // pred_fallthru
        _
      %p1985 = scmp.le.s32.totalorder 2, %s28
      // Predicated region
      $region73: #{tpu_custom_call.1} parent=5 // pred_check
        %p1986 = pneg %p1985
      $region74: #{tpu_custom_call.1} parent=5 // pred_check_branch
        %1988 = sbr.rel (%p1986) target = $region76
      $region75: #{tpu_custom_call.1} parent=5 // pred_region
        %s1989 = ssub.s32 %s28, 2
        // Predicated region
        $region77: #{tpu_custom_call.1} parent=75 // pred_check
          %p1990 = pneg %p219
        $region78: #{tpu_custom_call.1} parent=75 // pred_check_branch
          %1992 = sbr.rel (%p1990) target = $region80
        $region79: #{tpu_custom_call.1} parent=75 // pred_region
          %s1993 = sand.u32 %s204, 1
          %s1994 = scalar_lea.sflag [#allocation4], %s1993
          %s1995 = sand.u32 %s204, 1
          %s1996 = smul.addr %s1995, 8
          %s1997 = scalar_lea.vmem [#allocation10], %s1996
          %1998 = dma.done %s1994, 128
        $region80: #{tpu_custom_call.1} parent=75 // pred_fallthru
          _
        // Predicated region
        $region81: #{tpu_custom_call.1} parent=75 // pred_check
          %p1999 = pneg %p245
        $region82: #{tpu_custom_call.1} parent=75 // pred_check_branch
          %2001 = sbr.rel (%p1999) target = $region84
        $region83: #{tpu_custom_call.1} parent=75 // pred_region
          %s2002 = sand.u32 %s230, 1
          %s2003 = scalar_lea.sflag [#allocation12], %s2002
          %s2004 = sand.u32 %s230, 1
          %s2005 = smul.addr %s2004, 8
          %s2006 = scalar_lea.vmem [#allocation11], %s2005
          %2007 = dma.done %s2003, 128
        $region84: #{tpu_custom_call.1} parent=75 // pred_fallthru
          _
      $region76: #{tpu_custom_call.1} parent=5 // pred_fallthru
        _
    $region6: #{tpu_custom_call.1} parent=1 // loop_footer
      %s32 = sadd.s32 1, %s28
    $region7: #{tpu_custom_call.1} parent=1 // loop_footer_branch
      %27 = sbr.rel target = $region3
    $region8: #{tpu_custom_call.1} parent=1 // loop_exit
      _
    %2008 = vsyncpa [#allocation3], 1
    %s2009 = scalar_lea.sflag [#allocation3], 1
    %2010 = vsyncpa %s2009, 1
    %2011 = vsyncpa [#allocation6], 1
    %s2012 = scalar_lea.sflag [#allocation6], 1
    %2013 = vsyncpa %s2012, 1
    %2014 = vsyncpa [#allocation9], 1
    %2015 = vsyncpa [#allocation4], 1
    %s2016 = scalar_lea.sflag [#allocation4], 1
    %2017 = vsyncpa %s2016, 1
    %2018 = vsyncpa [#allocation12], 1
    %s2019 = scalar_lea.sflag [#allocation12], 1
    %2020 = vsyncpa %s2019, 1

</llo_original>
